<compile_context>
chip_gen: v7x
topology: tpu7x:2x2x1
jax: 0.10.0
libtpu: 0.0.40
codegen_flags: <defaults>
</compile_context>

<pallas_src>
import functools

import jax
import jax.numpy as jnp
from jax import lax
from jax.experimental import pallas as pl
from jax.experimental.pallas import tpu as pltpu


def _round_up(n, m):
    return (n + m - 1) // m * m


def _pick_batch_tile(B, requested=None):
    """Static batch-tile / sub-tile choice (runs outside jit).
    256 fills a v6e 256-row MXU; 128 on v5e (128x128 MXUs already full) and on
    v7x-class cores (64 MiB VMEM, 2 TCs -> prefer >= 2 "parallel" tiles)."""
    B_pad8 = _round_up(max(B, 1), 8)
    if requested is not None:
        tb = max(8, _round_up(min(requested, B_pad8), 8))   # force sublane alignment
    else:
        tb = 256
        try:  # generation-dependent default; falls back silently off-TPU / old API
            info = pltpu.get_tpu_info()
            if int(getattr(info, "vmem_capacity_bytes", 128 << 20)) <= (64 << 20):
                tb = 128                                     # v7x-class core
            if "5" in str(getattr(info, "chip_version", "")):
                tb = 128                                     # v5e: 128 rows fill the MXU
        except Exception:
            pass
        tb = min(tb, B_pad8)
        # Prefer >= 2 batch tiles so the "parallel" axis can span both v7x TensorCores
        # (and gives the pipeline something to overlap on v5e/v6e).
        if B_pad8 == tb and B_pad8 >= 32:
            tb = _round_up(B_pad8 // 2, 8)
    # Interleave two independent sub-tiles only when both halves stay sublane-aligned.
    n_sub = 2 if (tb >= 16 and tb % 16 == 0) else 1
    return tb, n_sub


def _lstm_mlp_kernel(x_ref, wih_ref, bias_ref, whhT_ref, w1T_ref, b1_ref, w2_ref, b2_ref,
                     h0_ref, c0_ref,
                     y_ref, hn_ref, cn_ref,
                     *, T, H, n_sub, unroll):
    """One batch tile (all shapes padded):
         x_ref   : (TB, T)      f32   raw input (input_size == 1)
         wih_ref : (1, 4H)      f32   W_ih laid out as [i|f|g|o] gate blocks
         bias_ref: (1, 4H)      f32   b_ih + b_hh, gate-blocked
         whhT_ref: (H, 4H)      bf16  W_hh^T, gate-blocked
         w1T_ref : (H, H) bf16, b1_ref: (1, H) f32, w2_ref: (1, H) f32, b2_ref: (1, 1) f32
         h0/c0   : (TB, H)      f32
       Outputs: y (TB, 1), hn/cn (TB, H) f32."""
    TB = h0_ref.shape[0]
    SB = TB // n_sub
    f32 = jnp.float32

    # Per-sub-tile raw x rows, hoisted once (tiny: SB x T f32).
    x_sub = [x_ref[pl.ds(s * SB, SB), :] for s in range(n_sub)]
    t_iota = lax.broadcasted_iota(jnp.int32, (SB, T), 1)

    def step(t, carry):
        new = []
        for s in range(n_sub):           # two independent recurrences -> MXU/EUP/VPU overlap
            h, c = carry[s]
            # x_t as a (SB, 1) column via masked lane reduction: no dynamic lane slice,
            # independent of h, so it overlaps the recurrent matmul of the other chain.
            x_t = jnp.sum(jnp.where(t_iota == t, x_sub[s], 0.0), axis=1, keepdims=True)
            gates = (x_t * wih_ref[...] + bias_ref[...]
                     + jnp.dot(h.astype(jnp.bfloat16), whhT_ref[...],
                               preferred_element_type=f32))            # (SB, 4H)
            i = jax.nn.sigmoid(gates[:, 0 * H:1 * H])
            f = jax.nn.sigmoid(gates[:, 1 * H:2 * H])
            g = jnp.tanh(gates[:, 2 * H:3 * H])
            o = jax.nn.sigmoid(gates[:, 3 * H:4 * H])
            c_new = f * c + i * g
            h_new = o * jnp.tanh(c_new)
            new.append((h_new, c_new))
        return tuple(new)

    carry0 = tuple((h0_ref[pl.ds(s * SB, SB), :], c0_ref[pl.ds(s * SB, SB), :])
                   for s in range(n_sub))
    carry = lax.fori_loop(0, T, step, carry0, unroll=unroll)

    # MLP head on the last-step hidden state, per sub-tile.
    for s in range(n_sub):
        h, c = carry[s]
        rows = pl.ds(s * SB, SB)
        z = jnp.dot(h.astype(jnp.bfloat16), w1T_ref[...],
                    preferred_element_type=f32) + b1_ref[...]          # (SB, H)
        # (SB,H)@(H,1) as VPU mul + lane reduction instead of a 1-column MXU matmul.
        y = jnp.sum(z * w2_ref[...], axis=-1, keepdims=True) + b2_ref[...]
        y_ref[rows, :] = y
        hn_ref[rows, :] = h
        cn_ref[rows, :] = c


@functools.partial(jax.jit, static_argnums=(4, 5))
def _forward_jit(x, params, h_0, c_0, TB, n_sub):
    f32 = jnp.float32
    B, T = x.shape
    H = params["w_hh"].shape[1]

    H_pad = _round_up(H, 128)                 # lane-aligned hidden -> clean gate slices
    H4 = 4 * H_pad
    B_pad = _round_up(_round_up(B, 8), TB)
    n_tiles = B_pad // TB
    unroll = max(1, min(T, 4 if n_sub == 2 else 8))   # bounded unroll (live ranges / imem)

    # ---- repack parameters into padded, gate-blocked layout ----------------
    w_ih = params["w_ih"].reshape(4, H).astype(f32)
    wih_row = jnp.zeros((4, H_pad), f32).at[:, :H].set(w_ih).reshape(1, H4)
    bias = (params["b_ih"] + params["b_hh"]).reshape(4, H).astype(f32)
    bias_row = jnp.zeros((4, H_pad), f32).at[:, :H].set(bias).reshape(1, H4)

    whhT_pad = jnp.zeros((H_pad, 4, H_pad), f32)
    whhT_pad = whhT_pad.at[:H, :, :H].set(
        params["w_hh"].astype(f32).reshape(4, H, H).transpose(2, 0, 1))
    whhT_pad = whhT_pad.reshape(H_pad, H4).astype(jnp.bfloat16)

    w1T_pad = jnp.zeros((H_pad, H_pad), f32).at[:H, :H].set(
        params["w1"].T.astype(f32)).astype(jnp.bfloat16)
    b1_pad = jnp.zeros((1, H_pad), f32).at[0, :H].set(params["b1"].astype(f32))
    w2_row = jnp.zeros((1, H_pad), f32).at[0, :H].set(params["w2"].reshape(H).astype(f32))
    b2 = params["b2"].reshape(1, 1).astype(f32)

    # ---- raw x tile (no big precompute), padded rows zero -------------------
    x_p = jnp.zeros((B_pad, T), f32).at[:B, :].set(x.astype(f32))

    # ---- initial state (zero padding keeps padded lanes/rows exactly 0) -----
    h0 = jnp.zeros((B_pad, H_pad), f32)
    c0 = jnp.zeros((B_pad, H_pad), f32)
    if h_0 is not None and c_0 is not None:
        h0 = h0.at[:B, :H].set(h_0.reshape(B, H).astype(f32))
        c0 = c0.at[:B, :H].set(c_0.reshape(B, H).astype(f32))

    # ---- explicit scoped-VMEM budget (working set + headroom, v7x-safe cap) --
    weight_bytes = (H_pad * H4 + H_pad * H_pad) * 2 + (2 * H4 + 2 * H_pad + 1) * 4
    tile_bytes = (TB * T + 4 * TB * H_pad + TB) * 4          # x, h0, c0, hn, cn, y blocks
    scratch_bytes = 8 * TB * H4 * 4                          # gates / spill headroom
    vmem_limit = int(min(max(2 * weight_bytes + 2 * tile_bytes + scratch_bytes,
                             32 << 20), 48 << 20))

    const = lambda shape: pl.BlockSpec(shape, lambda i: (0,) * len(shape))
    btile = lambda shape: pl.BlockSpec(shape, lambda i: (i,) + (0,) * (len(shape) - 1))

    kernel = functools.partial(_lstm_mlp_kernel, T=T, H=H_pad, n_sub=n_sub, unroll=unroll)

    y_p, hn_p, cn_p = pl.pallas_call(
        kernel,
        grid=(n_tiles,),
        in_specs=[
            btile((TB, T)),            # x (batch-tiled, tiny)
            const((1, H4)),            # W_ih row
            const((1, H4)),            # fused bias row
            const((H_pad, H4)),        # W_hh^T (bf16, VMEM-resident)
            const((H_pad, H_pad)),     # W1^T   (bf16, VMEM-resident)
            const((1, H_pad)),         # b1
            const((1, H_pad)),         # w2 row
            const((1, 1)),             # b2
            btile((TB, H_pad)),        # h0
            btile((TB, H_pad)),        # c0
        ],
        out_specs=[
            btile((TB, 1)),
            btile((TB, H_pad)),
            btile((TB, H_pad)),
        ],
        out_shape=(
            jax.ShapeDtypeStruct((B_pad, 1), f32),
            jax.ShapeDtypeStruct((B_pad, H_pad), f32),
            jax.ShapeDtypeStruct((B_pad, H_pad), f32),
        ),
        compiler_params=pltpu.CompilerParams(
            dimension_semantics=("parallel",),     # batch tiles independent: megacore/pipe
            vmem_limit_bytes=vmem_limit),
    )(x_p, wih_row, bias_row, whhT_pad, w1T_pad, b1_pad, w2_row, b2, h0, c0)

    y = y_p[:B]
    h_n = hn_p[:B, :H][None, :, :]
    c_n = cn_p[:B, :H][None, :, :]
    return y, (h_n, c_n)


def interpolation_model_forward(x, params, h_0=None, c_0=None, *, batch_tile=None):
    """x: (B, T) float32 (PyTorch input before .unsqueeze(-1); input_size == 1).
       Returns (y (B,1), (h_n (1,B,H), c_n (1,B,H))) matching the PyTorch forward."""
    B, _ = x.shape
    TB, n_sub = _pick_batch_tile(B, batch_tile)
    return _forward_jit(x, params, h_0, c_0, TB, n_sub)


def init_params(key, hidden_size):
    """Deterministic synthetic parameters (PyTorch-style uniform(-1/sqrt(H), 1/sqrt(H)))."""
    H = hidden_size
    bound = 1.0 / jnp.sqrt(jnp.float32(H))
    ks = jax.random.split(key, 8)
    u = lambda k, shape: jax.random.uniform(k, shape, jnp.float32, -bound, bound)
    return {
        "w_ih": u(ks[0], (4 * H, 1)),
        "w_hh": u(ks[1], (4 * H, H)),
        "b_ih": u(ks[2], (4 * H,)),
        "b_hh": u(ks[3], (4 * H,)),
        "w1":   u(ks[4], (H, H)),
        "b1":   u(ks[5], (H,)),
        "w2":   u(ks[6], (1, H)),
        "b2":   u(ks[7], (1,)),
    }


def _reference_forward(x, params, weight_dtype=jnp.float32):
    """Pure-JAX reference of the PyTorch forward (weight_dtype controls matmul operand
       precision so we can compare at the kernel's bf16 precision and at full f32)."""
    f32 = jnp.float32
    B, T = x.shape
    H = params["w_hh"].shape[1]
    h = jnp.zeros((B, H), f32)
    c = jnp.zeros((B, H), f32)
    wih = params["w_ih"].reshape(1, 4 * H).astype(f32)
    whhT = params["w_hh"].T.astype(weight_dtype)
    b = (params["b_ih"] + params["b_hh"]).reshape(1, 4 * H).astype(f32)
    for t in range(T):
        gates = (x[:, t:t + 1].astype(f32) * wih
                 + jnp.dot(h.astype(weight_dtype), whhT, preferred_element_type=f32)
                 + b)
        i = jax.nn.sigmoid(gates[:, 0 * H:1 * H])
        f = jax.nn.sigmoid(gates[:, 1 * H:2 * H])
        g = jnp.tanh(gates[:, 2 * H:3 * H])
        o = jax.nn.sigmoid(gates[:, 3 * H:4 * H])
        c = f * c + i * g
        h = o * jnp.tanh(c)
    w1T = params["w1"].T.astype(weight_dtype)
    z = jnp.dot(h.astype(weight_dtype), w1T, preferred_element_type=f32) + params["b1"][None]
    y = z @ params["w2"].T.astype(f32) + params["b2"][None]
    return y, h, c


def _check(x, params, **kw):
    B, _ = x.shape
    H = params["w_hh"].shape[1]
    y, (h_n, c_n) = interpolation_model_forward(x, params, **kw)
    jax.block_until_ready((y, h_n, c_n))
    assert y.shape == (B, 1) and h_n.shape == (1, B, H) and c_n.shape == (1, B, H)
    # Tight check against a same-precision (bf16 matmul weights, f32 accum) reference.
    y_bf, h_bf, c_bf = _reference_forward(x, params, weight_dtype=jnp.bfloat16)
    assert jnp.allclose(y, y_bf, atol=1e-3), float(jnp.max(jnp.abs(y - y_bf)))
    assert jnp.allclose(h_n[0], h_bf, atol=1e-3)
    assert jnp.allclose(c_n[0], c_bf, atol=1e-3)
    # Loose semantic sanity check against the full-f32 reference (bf16 weight cast cost).
    y_f32, h_f32, c_f32 = _reference_forward(x, params, weight_dtype=jnp.float32)
    assert jnp.allclose(y, y_f32, atol=5e-2)
    assert jnp.allclose(h_n[0], h_f32, atol=5e-2)
    assert jnp.allclose(c_n[0], c_f32, atol=5e-2)


if __name__ == "__main__":
    # Small stand-in for production (B up to ~1024, T ~64, hidden_size=256).
    T, H = 8, 32
    key = jax.random.PRNGKey(0)
    k_param, k_x1, k_x2 = jax.random.split(key, 3)
    params = init_params(k_param, H)

    # 1) tiny batch: single tile, single chain.
    x1 = jax.random.normal(k_x1, (2, T), jnp.float32)
    _check(x1, params)

    # 2) multi-tile + two interleaved sub-tiles path (batch_tile=16 -> SB=8, 2 tiles).
    x2 = jax.random.normal(k_x2, (20, T), jnp.float32)
    _check(x2, params, batch_tile=16)

    print("KERNEL_OK")
</pallas_src>

<mosaic_0001>
module attributes {stable_mosaic.version = 11 : i64} {
  func.func @_lstm_mlp_kernel(%arg0: i32, %arg1: memref<8x8xf32, #tpu.memory_space<vmem>>, %arg2: memref<1x512xf32, #tpu.memory_space<vmem>>, %arg3: memref<1x512xf32, #tpu.memory_space<vmem>>, %arg4: memref<128x512xbf16, #tpu.memory_space<vmem>>, %arg5: memref<128x128xbf16, #tpu.memory_space<vmem>>, %arg6: memref<1x128xf32, #tpu.memory_space<vmem>>, %arg7: memref<1x128xf32, #tpu.memory_space<vmem>>, %arg8: memref<1x1xf32, #tpu.memory_space<vmem>>, %arg9: memref<8x128xf32, #tpu.memory_space<vmem>>, %arg10: memref<8x128xf32, #tpu.memory_space<vmem>>, %arg11: memref<8x1xf32, #tpu.memory_space<vmem>>, %arg12: memref<8x128xf32, #tpu.memory_space<vmem>>, %arg13: memref<8x128xf32, #tpu.memory_space<vmem>>) attributes {dimension_semantics = [#tpu.dimension_semantics<parallel>], iteration_bounds = array<i64: 1>, scalar_prefetch = 0 : i64, scratch_operands = 0 : i64, tpu.core_type = #tpu.core_type<tc>, window_params = [{transform_indices = @transform_0, window_bounds = array<i64: 8, 8>}, {pipeline_mode = #tpu.pipeline_mode<synchronous>, transform_indices = @transform_1, window_bounds = array<i64: 1, 512>}, {pipeline_mode = #tpu.pipeline_mode<synchronous>, transform_indices = @transform_2, window_bounds = array<i64: 1, 512>}, {pipeline_mode = #tpu.pipeline_mode<synchronous>, transform_indices = @transform_3, window_bounds = array<i64: 128, 512>}, {pipeline_mode = #tpu.pipeline_mode<synchronous>, transform_indices = @transform_4, window_bounds = array<i64: 128, 128>}, {pipeline_mode = #tpu.pipeline_mode<synchronous>, transform_indices = @transform_5, window_bounds = array<i64: 1, 128>}, {pipeline_mode = #tpu.pipeline_mode<synchronous>, transform_indices = @transform_6, window_bounds = array<i64: 1, 128>}, {pipeline_mode = #tpu.pipeline_mode<synchronous>, transform_indices = @transform_7, window_bounds = array<i64: 1, 1>}, {transform_indices = @transform_8, window_bounds = array<i64: 8, 128>}, {transform_indices = @transform_9, window_bounds = array<i64: 8, 128>}, {transform_indices = @transform_10, window_bounds = array<i64: 8, 1>}, {transform_indices = @transform_11, window_bounds = array<i64: 8, 128>}, {transform_indices = @transform_12, window_bounds = array<i64: 8, 128>}]} {
    %c0 = arith.constant 0 : index
    %c0_0 = arith.constant 0 : index
    %0 = vector.load %arg1[%c0, %c0_0] : memref<8x8xf32, #tpu.memory_space<vmem>>, vector<8x8xf32>
    %1 = tpu.iota {dimensions = array<i32: 1>} : vector<8x8xi32>
    %c0_1 = arith.constant 0 : index
    %c0_2 = arith.constant 0 : index
    %2 = vector.load %arg9[%c0_1, %c0_2] : memref<8x128xf32, #tpu.memory_space<vmem>>, vector<8x128xf32>
    %c0_3 = arith.constant 0 : index
    %c0_4 = arith.constant 0 : index
    %3 = vector.load %arg10[%c0_3, %c0_4] : memref<8x128xf32, #tpu.memory_space<vmem>>, vector<8x128xf32>
    %c0_i32 = arith.constant 0 : i32
    %4 = vector.broadcast %c0_i32 : i32 to vector<8x8xi32>
    %5 = arith.cmpi eq, %1, %4 : vector<8x8xi32>
    %cst = arith.constant 0.000000e+00 : f32
    %6 = vector.broadcast %cst : f32 to vector<8x8xf32>
    %7 = arith.select %5, %0, %6 : vector<8x8xi1>, vector<8x8xf32>
    %cst_5 = arith.constant dense<0.000000e+00> : vector<8xf32>
    %8 = vector.multi_reduction <add>, %7, %cst_5 [1] : vector<8x8xf32> to vector<8xf32>
    %9 = vector.shape_cast %8 : vector<8xf32> to vector<8x1xf32>
    %c0_6 = arith.constant 0 : index
    %c0_7 = arith.constant 0 : index
    %10 = vector.load %arg2[%c0_6, %c0_7] : memref<1x512xf32, #tpu.memory_space<vmem>>, vector<1x512xf32>
    %11 = vector.broadcast %9 : vector<8x1xf32> to vector<8x512xf32>
    %12 = vector.broadcast %10 : vector<1x512xf32> to vector<8x512xf32>
    %13 = arith.mulf %11, %12 : vector<8x512xf32>
    %c0_8 = arith.constant 0 : index
    %c0_9 = arith.constant 0 : index
    %14 = vector.load %arg3[%c0_8, %c0_9] : memref<1x512xf32, #tpu.memory_space<vmem>>, vector<1x512xf32>
    %15 = vector.broadcast %14 : vector<1x512xf32> to vector<8x512xf32>
    %16 = arith.addf %13, %15 : vector<8x512xf32>
    %17 = arith.truncf %2 : vector<8x128xf32> to vector<8x128xbf16>
    %c0_10 = arith.constant 0 : index
    %c0_11 = arith.constant 0 : index
    %18 = vector.load %arg4[%c0_10, %c0_11] : memref<128x512xbf16, #tpu.memory_space<vmem>>, vector<128x512xbf16>
    %cst_12 = arith.constant dense<0.000000e+00> : vector<8x512xf32>
    %19 = tpu.matmul %17, %18, %cst_12 {dimension_numbers = #tpu.dot_dimension_numbers<[1], [0], [0], [1], [0, 0, 1, 1], [], []>} : vector<8x128xbf16>, vector<128x512xbf16>, vector<8x512xf32> -> vector<8x512xf32>
    %20 = arith.addf %16, %19 : vector<8x512xf32>
    %21 = vector.extract_strided_slice %20 {offsets = [0, 0], sizes = [8, 128], strides = [1, 1]} : vector<8x512xf32> to vector<8x128xf32>
    %22 = arith.negf %21 : vector<8x128xf32>
    %23 = math.exp %22 : vector<8x128xf32>
    %cst_13 = arith.constant 1.000000e+00 : f32
    %24 = vector.broadcast %cst_13 : f32 to vector<8x128xf32>
    %25 = arith.addf %24, %23 : vector<8x128xf32>
    %26 = arith.divf %24, %25 : vector<8x128xf32>
    %27 = vector.extract_strided_slice %20 {offsets = [0, 128], sizes = [8, 128], strides = [1, 1]} : vector<8x512xf32> to vector<8x128xf32>
    %28 = arith.negf %27 : vector<8x128xf32>
    %29 = math.exp %28 : vector<8x128xf32>
    %cst_14 = arith.constant 1.000000e+00 : f32
    %30 = vector.broadcast %cst_14 : f32 to vector<8x128xf32>
    %31 = arith.addf %30, %29 : vector<8x128xf32>
    %32 = arith.divf %30, %31 : vector<8x128xf32>
    %33 = vector.extract_strided_slice %20 {offsets = [0, 256], sizes = [8, 128], strides = [1, 1]} : vector<8x512xf32> to vector<8x128xf32>
    %34 = math.tanh %33 : vector<8x128xf32>
    %35 = vector.extract_strided_slice %20 {offsets = [0, 384], sizes = [8, 128], strides = [1, 1]} : vector<8x512xf32> to vector<8x128xf32>
    %36 = arith.negf %35 : vector<8x128xf32>
    %37 = math.exp %36 : vector<8x128xf32>
    %cst_15 = arith.constant 1.000000e+00 : f32
    %38 = vector.broadcast %cst_15 : f32 to vector<8x128xf32>
    %39 = arith.addf %38, %37 : vector<8x128xf32>
    %40 = arith.divf %38, %39 : vector<8x128xf32>
    %41 = arith.mulf %32, %3 : vector<8x128xf32>
    %42 = arith.mulf %26, %34 : vector<8x128xf32>
    %43 = arith.addf %41, %42 : vector<8x128xf32>
    %44 = math.tanh %43 : vector<8x128xf32>
    %45 = arith.mulf %40, %44 : vector<8x128xf32>
    %c1_i32 = arith.constant 1 : i32
    %46 = vector.broadcast %c1_i32 : i32 to vector<8x8xi32>
    %47 = arith.cmpi eq, %1, %46 : vector<8x8xi32>
    %cst_16 = arith.constant 0.000000e+00 : f32
    %48 = vector.broadcast %cst_16 : f32 to vector<8x8xf32>
    %49 = arith.select %47, %0, %48 : vector<8x8xi1>, vector<8x8xf32>
    %cst_17 = arith.constant dense<0.000000e+00> : vector<8xf32>
    %50 = vector.multi_reduction <add>, %49, %cst_17 [1] : vector<8x8xf32> to vector<8xf32>
    %51 = vector.shape_cast %50 : vector<8xf32> to vector<8x1xf32>
    %c0_18 = arith.constant 0 : index
    %c0_19 = arith.constant 0 : index
    %52 = vector.load %arg2[%c0_18, %c0_19] : memref<1x512xf32, #tpu.memory_space<vmem>>, vector<1x512xf32>
    %53 = vector.broadcast %51 : vector<8x1xf32> to vector<8x512xf32>
    %54 = vector.broadcast %52 : vector<1x512xf32> to vector<8x512xf32>
    %55 = arith.mulf %53, %54 : vector<8x512xf32>
    %c0_20 = arith.constant 0 : index
    %c0_21 = arith.constant 0 : index
    %56 = vector.load %arg3[%c0_20, %c0_21] : memref<1x512xf32, #tpu.memory_space<vmem>>, vector<1x512xf32>
    %57 = vector.broadcast %56 : vector<1x512xf32> to vector<8x512xf32>
    %58 = arith.addf %55, %57 : vector<8x512xf32>
    %59 = arith.truncf %45 : vector<8x128xf32> to vector<8x128xbf16>
    %c0_22 = arith.constant 0 : index
    %c0_23 = arith.constant 0 : index
    %60 = vector.load %arg4[%c0_22, %c0_23] : memref<128x512xbf16, #tpu.memory_space<vmem>>, vector<128x512xbf16>
    %cst_24 = arith.constant dense<0.000000e+00> : vector<8x512xf32>
    %61 = tpu.matmul %59, %60, %cst_24 {dimension_numbers = #tpu.dot_dimension_numbers<[1], [0], [0], [1], [0, 0, 1, 1], [], []>} : vector<8x128xbf16>, vector<128x512xbf16>, vector<8x512xf32> -> vector<8x512xf32>
    %62 = arith.addf %58, %61 : vector<8x512xf32>
    %63 = vector.extract_strided_slice %62 {offsets = [0, 0], sizes = [8, 128], strides = [1, 1]} : vector<8x512xf32> to vector<8x128xf32>
    %64 = arith.negf %63 : vector<8x128xf32>
    %65 = math.exp %64 : vector<8x128xf32>
    %cst_25 = arith.constant 1.000000e+00 : f32
    %66 = vector.broadcast %cst_25 : f32 to vector<8x128xf32>
    %67 = arith.addf %66, %65 : vector<8x128xf32>
    %68 = arith.divf %66, %67 : vector<8x128xf32>
    %69 = vector.extract_strided_slice %62 {offsets = [0, 128], sizes = [8, 128], strides = [1, 1]} : vector<8x512xf32> to vector<8x128xf32>
    %70 = arith.negf %69 : vector<8x128xf32>
    %71 = math.exp %70 : vector<8x128xf32>
    %cst_26 = arith.constant 1.000000e+00 : f32
    %72 = vector.broadcast %cst_26 : f32 to vector<8x128xf32>
    %73 = arith.addf %72, %71 : vector<8x128xf32>
    %74 = arith.divf %72, %73 : vector<8x128xf32>
    %75 = vector.extract_strided_slice %62 {offsets = [0, 256], sizes = [8, 128], strides = [1, 1]} : vector<8x512xf32> to vector<8x128xf32>
    %76 = math.tanh %75 : vector<8x128xf32>
    %77 = vector.extract_strided_slice %62 {offsets = [0, 384], sizes = [8, 128], strides = [1, 1]} : vector<8x512xf32> to vector<8x128xf32>
    %78 = arith.negf %77 : vector<8x128xf32>
    %79 = math.exp %78 : vector<8x128xf32>
    %cst_27 = arith.constant 1.000000e+00 : f32
    %80 = vector.broadcast %cst_27 : f32 to vector<8x128xf32>
    %81 = arith.addf %80, %79 : vector<8x128xf32>
    %82 = arith.divf %80, %81 : vector<8x128xf32>
    %83 = arith.mulf %74, %43 : vector<8x128xf32>
    %84 = arith.mulf %68, %76 : vector<8x128xf32>
    %85 = arith.addf %83, %84 : vector<8x128xf32>
    %86 = math.tanh %85 : vector<8x128xf32>
    %87 = arith.mulf %82, %86 : vector<8x128xf32>
    %c2_i32 = arith.constant 2 : i32
    %88 = vector.broadcast %c2_i32 : i32 to vector<8x8xi32>
    %89 = arith.cmpi eq, %1, %88 : vector<8x8xi32>
    %cst_28 = arith.constant 0.000000e+00 : f32
    %90 = vector.broadcast %cst_28 : f32 to vector<8x8xf32>
    %91 = arith.select %89, %0, %90 : vector<8x8xi1>, vector<8x8xf32>
    %cst_29 = arith.constant dense<0.000000e+00> : vector<8xf32>
    %92 = vector.multi_reduction <add>, %91, %cst_29 [1] : vector<8x8xf32> to vector<8xf32>
    %93 = vector.shape_cast %92 : vector<8xf32> to vector<8x1xf32>
    %c0_30 = arith.constant 0 : index
    %c0_31 = arith.constant 0 : index
    %94 = vector.load %arg2[%c0_30, %c0_31] : memref<1x512xf32, #tpu.memory_space<vmem>>, vector<1x512xf32>
    %95 = vector.broadcast %93 : vector<8x1xf32> to vector<8x512xf32>
    %96 = vector.broadcast %94 : vector<1x512xf32> to vector<8x512xf32>
    %97 = arith.mulf %95, %96 : vector<8x512xf32>
    %c0_32 = arith.constant 0 : index
    %c0_33 = arith.constant 0 : index
    %98 = vector.load %arg3[%c0_32, %c0_33] : memref<1x512xf32, #tpu.memory_space<vmem>>, vector<1x512xf32>
    %99 = vector.broadcast %98 : vector<1x512xf32> to vector<8x512xf32>
    %100 = arith.addf %97, %99 : vector<8x512xf32>
    %101 = arith.truncf %87 : vector<8x128xf32> to vector<8x128xbf16>
    %c0_34 = arith.constant 0 : index
    %c0_35 = arith.constant 0 : index
    %102 = vector.load %arg4[%c0_34, %c0_35] : memref<128x512xbf16, #tpu.memory_space<vmem>>, vector<128x512xbf16>
    %cst_36 = arith.constant dense<0.000000e+00> : vector<8x512xf32>
    %103 = tpu.matmul %101, %102, %cst_36 {dimension_numbers = #tpu.dot_dimension_numbers<[1], [0], [0], [1], [0, 0, 1, 1], [], []>} : vector<8x128xbf16>, vector<128x512xbf16>, vector<8x512xf32> -> vector<8x512xf32>
    %104 = arith.addf %100, %103 : vector<8x512xf32>
    %105 = vector.extract_strided_slice %104 {offsets = [0, 0], sizes = [8, 128], strides = [1, 1]} : vector<8x512xf32> to vector<8x128xf32>
    %106 = arith.negf %105 : vector<8x128xf32>
    %107 = math.exp %106 : vector<8x128xf32>
    %cst_37 = arith.constant 1.000000e+00 : f32
    %108 = vector.broadcast %cst_37 : f32 to vector<8x128xf32>
    %109 = arith.addf %108, %107 : vector<8x128xf32>
    %110 = arith.divf %108, %109 : vector<8x128xf32>
    %111 = vector.extract_strided_slice %104 {offsets = [0, 128], sizes = [8, 128], strides = [1, 1]} : vector<8x512xf32> to vector<8x128xf32>
    %112 = arith.negf %111 : vector<8x128xf32>
    %113 = math.exp %112 : vector<8x128xf32>
    %cst_38 = arith.constant 1.000000e+00 : f32
    %114 = vector.broadcast %cst_38 : f32 to vector<8x128xf32>
    %115 = arith.addf %114, %113 : vector<8x128xf32>
    %116 = arith.divf %114, %115 : vector<8x128xf32>
    %117 = vector.extract_strided_slice %104 {offsets = [0, 256], sizes = [8, 128], strides = [1, 1]} : vector<8x512xf32> to vector<8x128xf32>
    %118 = math.tanh %117 : vector<8x128xf32>
    %119 = vector.extract_strided_slice %104 {offsets = [0, 384], sizes = [8, 128], strides = [1, 1]} : vector<8x512xf32> to vector<8x128xf32>
    %120 = arith.negf %119 : vector<8x128xf32>
    %121 = math.exp %120 : vector<8x128xf32>
    %cst_39 = arith.constant 1.000000e+00 : f32
    %122 = vector.broadcast %cst_39 : f32 to vector<8x128xf32>
    %123 = arith.addf %122, %121 : vector<8x128xf32>
    %124 = arith.divf %122, %123 : vector<8x128xf32>
    %125 = arith.mulf %116, %85 : vector<8x128xf32>
    %126 = arith.mulf %110, %118 : vector<8x128xf32>
    %127 = arith.addf %125, %126 : vector<8x128xf32>
    %128 = math.tanh %127 : vector<8x128xf32>
    %129 = arith.mulf %124, %128 : vector<8x128xf32>
    %c3_i32 = arith.constant 3 : i32
    %130 = vector.broadcast %c3_i32 : i32 to vector<8x8xi32>
    %131 = arith.cmpi eq, %1, %130 : vector<8x8xi32>
    %cst_40 = arith.constant 0.000000e+00 : f32
    %132 = vector.broadcast %cst_40 : f32 to vector<8x8xf32>
    %133 = arith.select %131, %0, %132 : vector<8x8xi1>, vector<8x8xf32>
    %cst_41 = arith.constant dense<0.000000e+00> : vector<8xf32>
    %134 = vector.multi_reduction <add>, %133, %cst_41 [1] : vector<8x8xf32> to vector<8xf32>
    %135 = vector.shape_cast %134 : vector<8xf32> to vector<8x1xf32>
    %c0_42 = arith.constant 0 : index
    %c0_43 = arith.constant 0 : index
    %136 = vector.load %arg2[%c0_42, %c0_43] : memref<1x512xf32, #tpu.memory_space<vmem>>, vector<1x512xf32>
    %137 = vector.broadcast %135 : vector<8x1xf32> to vector<8x512xf32>
    %138 = vector.broadcast %136 : vector<1x512xf32> to vector<8x512xf32>
    %139 = arith.mulf %137, %138 : vector<8x512xf32>
    %c0_44 = arith.constant 0 : index
    %c0_45 = arith.constant 0 : index
    %140 = vector.load %arg3[%c0_44, %c0_45] : memref<1x512xf32, #tpu.memory_space<vmem>>, vector<1x512xf32>
    %141 = vector.broadcast %140 : vector<1x512xf32> to vector<8x512xf32>
    %142 = arith.addf %139, %141 : vector<8x512xf32>
    %143 = arith.truncf %129 : vector<8x128xf32> to vector<8x128xbf16>
    %c0_46 = arith.constant 0 : index
    %c0_47 = arith.constant 0 : index
    %144 = vector.load %arg4[%c0_46, %c0_47] : memref<128x512xbf16, #tpu.memory_space<vmem>>, vector<128x512xbf16>
    %cst_48 = arith.constant dense<0.000000e+00> : vector<8x512xf32>
    %145 = tpu.matmul %143, %144, %cst_48 {dimension_numbers = #tpu.dot_dimension_numbers<[1], [0], [0], [1], [0, 0, 1, 1], [], []>} : vector<8x128xbf16>, vector<128x512xbf16>, vector<8x512xf32> -> vector<8x512xf32>
    %146 = arith.addf %142, %145 : vector<8x512xf32>
    %147 = vector.extract_strided_slice %146 {offsets = [0, 0], sizes = [8, 128], strides = [1, 1]} : vector<8x512xf32> to vector<8x128xf32>
    %148 = arith.negf %147 : vector<8x128xf32>
    %149 = math.exp %148 : vector<8x128xf32>
    %cst_49 = arith.constant 1.000000e+00 : f32
    %150 = vector.broadcast %cst_49 : f32 to vector<8x128xf32>
    %151 = arith.addf %150, %149 : vector<8x128xf32>
    %152 = arith.divf %150, %151 : vector<8x128xf32>
    %153 = vector.extract_strided_slice %146 {offsets = [0, 128], sizes = [8, 128], strides = [1, 1]} : vector<8x512xf32> to vector<8x128xf32>
    %154 = arith.negf %153 : vector<8x128xf32>
    %155 = math.exp %154 : vector<8x128xf32>
    %cst_50 = arith.constant 1.000000e+00 : f32
    %156 = vector.broadcast %cst_50 : f32 to vector<8x128xf32>
    %157 = arith.addf %156, %155 : vector<8x128xf32>
    %158 = arith.divf %156, %157 : vector<8x128xf32>
    %159 = vector.extract_strided_slice %146 {offsets = [0, 256], sizes = [8, 128], strides = [1, 1]} : vector<8x512xf32> to vector<8x128xf32>
    %160 = math.tanh %159 : vector<8x128xf32>
    %161 = vector.extract_strided_slice %146 {offsets = [0, 384], sizes = [8, 128], strides = [1, 1]} : vector<8x512xf32> to vector<8x128xf32>
    %162 = arith.negf %161 : vector<8x128xf32>
    %163 = math.exp %162 : vector<8x128xf32>
    %cst_51 = arith.constant 1.000000e+00 : f32
    %164 = vector.broadcast %cst_51 : f32 to vector<8x128xf32>
    %165 = arith.addf %164, %163 : vector<8x128xf32>
    %166 = arith.divf %164, %165 : vector<8x128xf32>
    %167 = arith.mulf %158, %127 : vector<8x128xf32>
    %168 = arith.mulf %152, %160 : vector<8x128xf32>
    %169 = arith.addf %167, %168 : vector<8x128xf32>
    %170 = math.tanh %169 : vector<8x128xf32>
    %171 = arith.mulf %166, %170 : vector<8x128xf32>
    %c4_i32 = arith.constant 4 : i32
    %172 = vector.broadcast %c4_i32 : i32 to vector<8x8xi32>
    %173 = arith.cmpi eq, %1, %172 : vector<8x8xi32>
    %cst_52 = arith.constant 0.000000e+00 : f32
    %174 = vector.broadcast %cst_52 : f32 to vector<8x8xf32>
    %175 = arith.select %173, %0, %174 : vector<8x8xi1>, vector<8x8xf32>
    %cst_53 = arith.constant dense<0.000000e+00> : vector<8xf32>
    %176 = vector.multi_reduction <add>, %175, %cst_53 [1] : vector<8x8xf32> to vector<8xf32>
    %177 = vector.shape_cast %176 : vector<8xf32> to vector<8x1xf32>
    %c0_54 = arith.constant 0 : index
    %c0_55 = arith.constant 0 : index
    %178 = vector.load %arg2[%c0_54, %c0_55] : memref<1x512xf32, #tpu.memory_space<vmem>>, vector<1x512xf32>
    %179 = vector.broadcast %177 : vector<8x1xf32> to vector<8x512xf32>
    %180 = vector.broadcast %178 : vector<1x512xf32> to vector<8x512xf32>
    %181 = arith.mulf %179, %180 : vector<8x512xf32>
    %c0_56 = arith.constant 0 : index
    %c0_57 = arith.constant 0 : index
    %182 = vector.load %arg3[%c0_56, %c0_57] : memref<1x512xf32, #tpu.memory_space<vmem>>, vector<1x512xf32>
    %183 = vector.broadcast %182 : vector<1x512xf32> to vector<8x512xf32>
    %184 = arith.addf %181, %183 : vector<8x512xf32>
    %185 = arith.truncf %171 : vector<8x128xf32> to vector<8x128xbf16>
    %c0_58 = arith.constant 0 : index
    %c0_59 = arith.constant 0 : index
    %186 = vector.load %arg4[%c0_58, %c0_59] : memref<128x512xbf16, #tpu.memory_space<vmem>>, vector<128x512xbf16>
    %cst_60 = arith.constant dense<0.000000e+00> : vector<8x512xf32>
    %187 = tpu.matmul %185, %186, %cst_60 {dimension_numbers = #tpu.dot_dimension_numbers<[1], [0], [0], [1], [0, 0, 1, 1], [], []>} : vector<8x128xbf16>, vector<128x512xbf16>, vector<8x512xf32> -> vector<8x512xf32>
    %188 = arith.addf %184, %187 : vector<8x512xf32>
    %189 = vector.extract_strided_slice %188 {offsets = [0, 0], sizes = [8, 128], strides = [1, 1]} : vector<8x512xf32> to vector<8x128xf32>
    %190 = arith.negf %189 : vector<8x128xf32>
    %191 = math.exp %190 : vector<8x128xf32>
    %cst_61 = arith.constant 1.000000e+00 : f32
    %192 = vector.broadcast %cst_61 : f32 to vector<8x128xf32>
    %193 = arith.addf %192, %191 : vector<8x128xf32>
    %194 = arith.divf %192, %193 : vector<8x128xf32>
    %195 = vector.extract_strided_slice %188 {offsets = [0, 128], sizes = [8, 128], strides = [1, 1]} : vector<8x512xf32> to vector<8x128xf32>
    %196 = arith.negf %195 : vector<8x128xf32>
    %197 = math.exp %196 : vector<8x128xf32>
    %cst_62 = arith.constant 1.000000e+00 : f32
    %198 = vector.broadcast %cst_62 : f32 to vector<8x128xf32>
    %199 = arith.addf %198, %197 : vector<8x128xf32>
    %200 = arith.divf %198, %199 : vector<8x128xf32>
    %201 = vector.extract_strided_slice %188 {offsets = [0, 256], sizes = [8, 128], strides = [1, 1]} : vector<8x512xf32> to vector<8x128xf32>
    %202 = math.tanh %201 : vector<8x128xf32>
    %203 = vector.extract_strided_slice %188 {offsets = [0, 384], sizes = [8, 128], strides = [1, 1]} : vector<8x512xf32> to vector<8x128xf32>
    %204 = arith.negf %203 : vector<8x128xf32>
    %205 = math.exp %204 : vector<8x128xf32>
    %cst_63 = arith.constant 1.000000e+00 : f32
    %206 = vector.broadcast %cst_63 : f32 to vector<8x128xf32>
    %207 = arith.addf %206, %205 : vector<8x128xf32>
    %208 = arith.divf %206, %207 : vector<8x128xf32>
    %209 = arith.mulf %200, %169 : vector<8x128xf32>
    %210 = arith.mulf %194, %202 : vector<8x128xf32>
    %211 = arith.addf %209, %210 : vector<8x128xf32>
    %212 = math.tanh %211 : vector<8x128xf32>
    %213 = arith.mulf %208, %212 : vector<8x128xf32>
    %c5_i32 = arith.constant 5 : i32
    %214 = vector.broadcast %c5_i32 : i32 to vector<8x8xi32>
    %215 = arith.cmpi eq, %1, %214 : vector<8x8xi32>
    %cst_64 = arith.constant 0.000000e+00 : f32
    %216 = vector.broadcast %cst_64 : f32 to vector<8x8xf32>
    %217 = arith.select %215, %0, %216 : vector<8x8xi1>, vector<8x8xf32>
    %cst_65 = arith.constant dense<0.000000e+00> : vector<8xf32>
    %218 = vector.multi_reduction <add>, %217, %cst_65 [1] : vector<8x8xf32> to vector<8xf32>
    %219 = vector.shape_cast %218 : vector<8xf32> to vector<8x1xf32>
    %c0_66 = arith.constant 0 : index
    %c0_67 = arith.constant 0 : index
    %220 = vector.load %arg2[%c0_66, %c0_67] : memref<1x512xf32, #tpu.memory_space<vmem>>, vector<1x512xf32>
    %221 = vector.broadcast %219 : vector<8x1xf32> to vector<8x512xf32>
    %222 = vector.broadcast %220 : vector<1x512xf32> to vector<8x512xf32>
    %223 = arith.mulf %221, %222 : vector<8x512xf32>
    %c0_68 = arith.constant 0 : index
    %c0_69 = arith.constant 0 : index
    %224 = vector.load %arg3[%c0_68, %c0_69] : memref<1x512xf32, #tpu.memory_space<vmem>>, vector<1x512xf32>
    %225 = vector.broadcast %224 : vector<1x512xf32> to vector<8x512xf32>
    %226 = arith.addf %223, %225 : vector<8x512xf32>
    %227 = arith.truncf %213 : vector<8x128xf32> to vector<8x128xbf16>
    %c0_70 = arith.constant 0 : index
    %c0_71 = arith.constant 0 : index
    %228 = vector.load %arg4[%c0_70, %c0_71] : memref<128x512xbf16, #tpu.memory_space<vmem>>, vector<128x512xbf16>
    %cst_72 = arith.constant dense<0.000000e+00> : vector<8x512xf32>
    %229 = tpu.matmul %227, %228, %cst_72 {dimension_numbers = #tpu.dot_dimension_numbers<[1], [0], [0], [1], [0, 0, 1, 1], [], []>} : vector<8x128xbf16>, vector<128x512xbf16>, vector<8x512xf32> -> vector<8x512xf32>
    %230 = arith.addf %226, %229 : vector<8x512xf32>
    %231 = vector.extract_strided_slice %230 {offsets = [0, 0], sizes = [8, 128], strides = [1, 1]} : vector<8x512xf32> to vector<8x128xf32>
    %232 = arith.negf %231 : vector<8x128xf32>
    %233 = math.exp %232 : vector<8x128xf32>
    %cst_73 = arith.constant 1.000000e+00 : f32
    %234 = vector.broadcast %cst_73 : f32 to vector<8x128xf32>
    %235 = arith.addf %234, %233 : vector<8x128xf32>
    %236 = arith.divf %234, %235 : vector<8x128xf32>
    %237 = vector.extract_strided_slice %230 {offsets = [0, 128], sizes = [8, 128], strides = [1, 1]} : vector<8x512xf32> to vector<8x128xf32>
    %238 = arith.negf %237 : vector<8x128xf32>
    %239 = math.exp %238 : vector<8x128xf32>
    %cst_74 = arith.constant 1.000000e+00 : f32
    %240 = vector.broadcast %cst_74 : f32 to vector<8x128xf32>
    %241 = arith.addf %240, %239 : vector<8x128xf32>
    %242 = arith.divf %240, %241 : vector<8x128xf32>
    %243 = vector.extract_strided_slice %230 {offsets = [0, 256], sizes = [8, 128], strides = [1, 1]} : vector<8x512xf32> to vector<8x128xf32>
    %244 = math.tanh %243 : vector<8x128xf32>
    %245 = vector.extract_strided_slice %230 {offsets = [0, 384], sizes = [8, 128], strides = [1, 1]} : vector<8x512xf32> to vector<8x128xf32>
    %246 = arith.negf %245 : vector<8x128xf32>
    %247 = math.exp %246 : vector<8x128xf32>
    %cst_75 = arith.constant 1.000000e+00 : f32
    %248 = vector.broadcast %cst_75 : f32 to vector<8x128xf32>
    %249 = arith.addf %248, %247 : vector<8x128xf32>
    %250 = arith.divf %248, %249 : vector<8x128xf32>
    %251 = arith.mulf %242, %211 : vector<8x128xf32>
    %252 = arith.mulf %236, %244 : vector<8x128xf32>
    %253 = arith.addf %251, %252 : vector<8x128xf32>
    %254 = math.tanh %253 : vector<8x128xf32>
    %255 = arith.mulf %250, %254 : vector<8x128xf32>
    %c6_i32 = arith.constant 6 : i32
    %256 = vector.broadcast %c6_i32 : i32 to vector<8x8xi32>
    %257 = arith.cmpi eq, %1, %256 : vector<8x8xi32>
    %cst_76 = arith.constant 0.000000e+00 : f32
    %258 = vector.broadcast %cst_76 : f32 to vector<8x8xf32>
    %259 = arith.select %257, %0, %258 : vector<8x8xi1>, vector<8x8xf32>
    %cst_77 = arith.constant dense<0.000000e+00> : vector<8xf32>
    %260 = vector.multi_reduction <add>, %259, %cst_77 [1] : vector<8x8xf32> to vector<8xf32>
    %261 = vector.shape_cast %260 : vector<8xf32> to vector<8x1xf32>
    %c0_78 = arith.constant 0 : index
    %c0_79 = arith.constant 0 : index
    %262 = vector.load %arg2[%c0_78, %c0_79] : memref<1x512xf32, #tpu.memory_space<vmem>>, vector<1x512xf32>
    %263 = vector.broadcast %261 : vector<8x1xf32> to vector<8x512xf32>
    %264 = vector.broadcast %262 : vector<1x512xf32> to vector<8x512xf32>
    %265 = arith.mulf %263, %264 : vector<8x512xf32>
    %c0_80 = arith.constant 0 : index
    %c0_81 = arith.constant 0 : index
    %266 = vector.load %arg3[%c0_80, %c0_81] : memref<1x512xf32, #tpu.memory_space<vmem>>, vector<1x512xf32>
    %267 = vector.broadcast %266 : vector<1x512xf32> to vector<8x512xf32>
    %268 = arith.addf %265, %267 : vector<8x512xf32>
    %269 = arith.truncf %255 : vector<8x128xf32> to vector<8x128xbf16>
    %c0_82 = arith.constant 0 : index
    %c0_83 = arith.constant 0 : index
    %270 = vector.load %arg4[%c0_82, %c0_83] : memref<128x512xbf16, #tpu.memory_space<vmem>>, vector<128x512xbf16>
    %cst_84 = arith.constant dense<0.000000e+00> : vector<8x512xf32>
    %271 = tpu.matmul %269, %270, %cst_84 {dimension_numbers = #tpu.dot_dimension_numbers<[1], [0], [0], [1], [0, 0, 1, 1], [], []>} : vector<8x128xbf16>, vector<128x512xbf16>, vector<8x512xf32> -> vector<8x512xf32>
    %272 = arith.addf %268, %271 : vector<8x512xf32>
    %273 = vector.extract_strided_slice %272 {offsets = [0, 0], sizes = [8, 128], strides = [1, 1]} : vector<8x512xf32> to vector<8x128xf32>
    %274 = arith.negf %273 : vector<8x128xf32>
    %275 = math.exp %274 : vector<8x128xf32>
    %cst_85 = arith.constant 1.000000e+00 : f32
    %276 = vector.broadcast %cst_85 : f32 to vector<8x128xf32>
    %277 = arith.addf %276, %275 : vector<8x128xf32>
    %278 = arith.divf %276, %277 : vector<8x128xf32>
    %279 = vector.extract_strided_slice %272 {offsets = [0, 128], sizes = [8, 128], strides = [1, 1]} : vector<8x512xf32> to vector<8x128xf32>
    %280 = arith.negf %279 : vector<8x128xf32>
    %281 = math.exp %280 : vector<8x128xf32>
    %cst_86 = arith.constant 1.000000e+00 : f32
    %282 = vector.broadcast %cst_86 : f32 to vector<8x128xf32>
    %283 = arith.addf %282, %281 : vector<8x128xf32>
    %284 = arith.divf %282, %283 : vector<8x128xf32>
    %285 = vector.extract_strided_slice %272 {offsets = [0, 256], sizes = [8, 128], strides = [1, 1]} : vector<8x512xf32> to vector<8x128xf32>
    %286 = math.tanh %285 : vector<8x128xf32>
    %287 = vector.extract_strided_slice %272 {offsets = [0, 384], sizes = [8, 128], strides = [1, 1]} : vector<8x512xf32> to vector<8x128xf32>
    %288 = arith.negf %287 : vector<8x128xf32>
    %289 = math.exp %288 : vector<8x128xf32>
    %cst_87 = arith.constant 1.000000e+00 : f32
    %290 = vector.broadcast %cst_87 : f32 to vector<8x128xf32>
    %291 = arith.addf %290, %289 : vector<8x128xf32>
    %292 = arith.divf %290, %291 : vector<8x128xf32>
    %293 = arith.mulf %284, %253 : vector<8x128xf32>
    %294 = arith.mulf %278, %286 : vector<8x128xf32>
    %295 = arith.addf %293, %294 : vector<8x128xf32>
    %296 = math.tanh %295 : vector<8x128xf32>
    %297 = arith.mulf %292, %296 : vector<8x128xf32>
    %c7_i32 = arith.constant 7 : i32
    %298 = vector.broadcast %c7_i32 : i32 to vector<8x8xi32>
    %299 = arith.cmpi eq, %1, %298 : vector<8x8xi32>
    %cst_88 = arith.constant 0.000000e+00 : f32
    %300 = vector.broadcast %cst_88 : f32 to vector<8x8xf32>
    %301 = arith.select %299, %0, %300 : vector<8x8xi1>, vector<8x8xf32>
    %cst_89 = arith.constant dense<0.000000e+00> : vector<8xf32>
    %302 = vector.multi_reduction <add>, %301, %cst_89 [1] : vector<8x8xf32> to vector<8xf32>
    %303 = vector.shape_cast %302 : vector<8xf32> to vector<8x1xf32>
    %c0_90 = arith.constant 0 : index
    %c0_91 = arith.constant 0 : index
    %304 = vector.load %arg2[%c0_90, %c0_91] : memref<1x512xf32, #tpu.memory_space<vmem>>, vector<1x512xf32>
    %305 = vector.broadcast %303 : vector<8x1xf32> to vector<8x512xf32>
    %306 = vector.broadcast %304 : vector<1x512xf32> to vector<8x512xf32>
    %307 = arith.mulf %305, %306 : vector<8x512xf32>
    %c0_92 = arith.constant 0 : index
    %c0_93 = arith.constant 0 : index
    %308 = vector.load %arg3[%c0_92, %c0_93] : memref<1x512xf32, #tpu.memory_space<vmem>>, vector<1x512xf32>
    %309 = vector.broadcast %308 : vector<1x512xf32> to vector<8x512xf32>
    %310 = arith.addf %307, %309 : vector<8x512xf32>
    %311 = arith.truncf %297 : vector<8x128xf32> to vector<8x128xbf16>
    %c0_94 = arith.constant 0 : index
    %c0_95 = arith.constant 0 : index
    %312 = vector.load %arg4[%c0_94, %c0_95] : memref<128x512xbf16, #tpu.memory_space<vmem>>, vector<128x512xbf16>
    %cst_96 = arith.constant dense<0.000000e+00> : vector<8x512xf32>
    %313 = tpu.matmul %311, %312, %cst_96 {dimension_numbers = #tpu.dot_dimension_numbers<[1], [0], [0], [1], [0, 0, 1, 1], [], []>} : vector<8x128xbf16>, vector<128x512xbf16>, vector<8x512xf32> -> vector<8x512xf32>
    %314 = arith.addf %310, %313 : vector<8x512xf32>
    %315 = vector.extract_strided_slice %314 {offsets = [0, 0], sizes = [8, 128], strides = [1, 1]} : vector<8x512xf32> to vector<8x128xf32>
    %316 = arith.negf %315 : vector<8x128xf32>
    %317 = math.exp %316 : vector<8x128xf32>
    %cst_97 = arith.constant 1.000000e+00 : f32
    %318 = vector.broadcast %cst_97 : f32 to vector<8x128xf32>
    %319 = arith.addf %318, %317 : vector<8x128xf32>
    %320 = arith.divf %318, %319 : vector<8x128xf32>
    %321 = vector.extract_strided_slice %314 {offsets = [0, 128], sizes = [8, 128], strides = [1, 1]} : vector<8x512xf32> to vector<8x128xf32>
    %322 = arith.negf %321 : vector<8x128xf32>
    %323 = math.exp %322 : vector<8x128xf32>
    %cst_98 = arith.constant 1.000000e+00 : f32
    %324 = vector.broadcast %cst_98 : f32 to vector<8x128xf32>
    %325 = arith.addf %324, %323 : vector<8x128xf32>
    %326 = arith.divf %324, %325 : vector<8x128xf32>
    %327 = vector.extract_strided_slice %314 {offsets = [0, 256], sizes = [8, 128], strides = [1, 1]} : vector<8x512xf32> to vector<8x128xf32>
    %328 = math.tanh %327 : vector<8x128xf32>
    %329 = vector.extract_strided_slice %314 {offsets = [0, 384], sizes = [8, 128], strides = [1, 1]} : vector<8x512xf32> to vector<8x128xf32>
    %330 = arith.negf %329 : vector<8x128xf32>
    %331 = math.exp %330 : vector<8x128xf32>
    %cst_99 = arith.constant 1.000000e+00 : f32
    %332 = vector.broadcast %cst_99 : f32 to vector<8x128xf32>
    %333 = arith.addf %332, %331 : vector<8x128xf32>
    %334 = arith.divf %332, %333 : vector<8x128xf32>
    %335 = arith.mulf %326, %295 : vector<8x128xf32>
    %336 = arith.mulf %320, %328 : vector<8x128xf32>
    %337 = arith.addf %335, %336 : vector<8x128xf32>
    %338 = math.tanh %337 : vector<8x128xf32>
    %339 = arith.mulf %334, %338 : vector<8x128xf32>
    %c8_i32 = arith.constant 8 : i32
    %340 = arith.truncf %339 : vector<8x128xf32> to vector<8x128xbf16>
    %c0_100 = arith.constant 0 : index
    %c0_101 = arith.constant 0 : index
    %341 = vector.load %arg5[%c0_100, %c0_101] : memref<128x128xbf16, #tpu.memory_space<vmem>>, vector<128x128xbf16>
    %cst_102 = arith.constant dense<0.000000e+00> : vector<8x128xf32>
    %342 = tpu.matmul %340, %341, %cst_102 {dimension_numbers = #tpu.dot_dimension_numbers<[1], [0], [0], [1], [0, 0, 1, 1], [], []>} : vector<8x128xbf16>, vector<128x128xbf16>, vector<8x128xf32> -> vector<8x128xf32>
    %c0_103 = arith.constant 0 : index
    %c0_104 = arith.constant 0 : index
    %343 = vector.load %arg6[%c0_103, %c0_104] : memref<1x128xf32, #tpu.memory_space<vmem>>, vector<1x128xf32>
    %344 = vector.broadcast %343 : vector<1x128xf32> to vector<8x128xf32>
    %345 = arith.addf %342, %344 : vector<8x128xf32>
    %c0_105 = arith.constant 0 : index
    %c0_106 = arith.constant 0 : index
    %346 = vector.load %arg7[%c0_105, %c0_106] : memref<1x128xf32, #tpu.memory_space<vmem>>, vector<1x128xf32>
    %347 = vector.broadcast %346 : vector<1x128xf32> to vector<8x128xf32>
    %348 = arith.mulf %345, %347 : vector<8x128xf32>
    %cst_107 = arith.constant dense<0.000000e+00> : vector<8xf32>
    %349 = vector.multi_reduction <add>, %348, %cst_107 [1] : vector<8x128xf32> to vector<8xf32>
    %350 = vector.shape_cast %349 : vector<8xf32> to vector<8x1xf32>
    %c0_108 = arith.constant 0 : index
    %c0_109 = arith.constant 0 : index
    %351 = vector.load %arg8[%c0_108, %c0_109] : memref<1x1xf32, #tpu.memory_space<vmem>>, vector<1x1xf32>
    %352 = vector.broadcast %351 : vector<1x1xf32> to vector<8x1xf32>
    %353 = arith.addf %350, %352 : vector<8x1xf32>
    %c0_110 = arith.constant 0 : index
    %c0_111 = arith.constant 0 : index
    %354 = vector.load %arg11[%c0_110, %c0_111] : memref<8x1xf32, #tpu.memory_space<vmem>>, vector<8x1xf32>
    tpu.vector_store %arg11[%c0_110, %c0_111], %353 {strides = array<i32>} : memref<8x1xf32, #tpu.memory_space<vmem>>, vector<8x1xf32>,
    %c0_112 = arith.constant 0 : index
    %c0_113 = arith.constant 0 : index
    %355 = vector.load %arg12[%c0_112, %c0_113] : memref<8x128xf32, #tpu.memory_space<vmem>>, vector<8x128xf32>
    tpu.vector_store %arg12[%c0_112, %c0_113], %339 {strides = array<i32>} : memref<8x128xf32, #tpu.memory_space<vmem>>, vector<8x128xf32>,
    %c0_114 = arith.constant 0 : index
    %c0_115 = arith.constant 0 : index
    %356 = vector.load %arg13[%c0_114, %c0_115] : memref<8x128xf32, #tpu.memory_space<vmem>>, vector<8x128xf32>
    tpu.vector_store %arg13[%c0_114, %c0_115], %337 {strides = array<i32>} : memref<8x128xf32, #tpu.memory_space<vmem>>, vector<8x128xf32>,
    return
  }
  func.func @transform_0(%arg0: i32) -> (i32, i32) {
    %c0_i32 = arith.constant 0 : i32
    %c0_i32_0 = arith.constant 0 : i32
    return %arg0, %c0_i32 : i32, i32
  }
  func.func @transform_1(%arg0: i32) -> (i32, i32) {
    %c0_i32 = arith.constant 0 : i32
    %c0_i32_0 = arith.constant 0 : i32
    %c0_i32_1 = arith.constant 0 : i32
    return %c0_i32, %c0_i32_0 : i32, i32
  }
  func.func @transform_2(%arg0: i32) -> (i32, i32) {
    %c0_i32 = arith.constant 0 : i32
    %c0_i32_0 = arith.constant 0 : i32
    %c0_i32_1 = arith.constant 0 : i32
    return %c0_i32, %c0_i32_0 : i32, i32
  }
  func.func @transform_3(%arg0: i32) -> (i32, i32) {
    %c0_i32 = arith.constant 0 : i32
    %c0_i32_0 = arith.constant 0 : i32
    %c0_i32_1 = arith.constant 0 : i32
    return %c0_i32, %c0_i32_0 : i32, i32
  }
  func.func @transform_4(%arg0: i32) -> (i32, i32) {
    %c0_i32 = arith.constant 0 : i32
    %c0_i32_0 = arith.constant 0 : i32
    %c0_i32_1 = arith.constant 0 : i32
    return %c0_i32, %c0_i32_0 : i32, i32
  }
  func.func @transform_5(%arg0: i32) -> (i32, i32) {
    %c0_i32 = arith.constant 0 : i32
    %c0_i32_0 = arith.constant 0 : i32
    %c0_i32_1 = arith.constant 0 : i32
    return %c0_i32, %c0_i32_0 : i32, i32
  }
  func.func @transform_6(%arg0: i32) -> (i32, i32) {
    %c0_i32 = arith.constant 0 : i32
    %c0_i32_0 = arith.constant 0 : i32
    %c0_i32_1 = arith.constant 0 : i32
    return %c0_i32, %c0_i32_0 : i32, i32
  }
  func.func @transform_7(%arg0: i32) -> (i32, i32) {
    %c0_i32 = arith.constant 0 : i32
    %c0_i32_0 = arith.constant 0 : i32
    %c0_i32_1 = arith.constant 0 : i32
    return %c0_i32, %c0_i32_0 : i32, i32
  }
  func.func @transform_8(%arg0: i32) -> (i32, i32) {
    %c0_i32 = arith.constant 0 : i32
    %c0_i32_0 = arith.constant 0 : i32
    return %arg0, %c0_i32 : i32, i32
  }
  func.func @transform_9(%arg0: i32) -> (i32, i32) {
    %c0_i32 = arith.constant 0 : i32
    %c0_i32_0 = arith.constant 0 : i32
    return %arg0, %c0_i32 : i32, i32
  }
  func.func @transform_10(%arg0: i32) -> (i32, i32) {
    %c0_i32 = arith.constant 0 : i32
    %c0_i32_0 = arith.constant 0 : i32
    return %arg0, %c0_i32 : i32, i32
  }
  func.func @transform_11(%arg0: i32) -> (i32, i32) {
    %c0_i32 = arith.constant 0 : i32
    %c0_i32_0 = arith.constant 0 : i32
    return %arg0, %c0_i32 : i32, i32
  }
  func.func @transform_12(%arg0: i32) -> (i32, i32) {
    %c0_i32 = arith.constant 0 : i32
    %c0_i32_0 = arith.constant 0 : i32
    return %arg0, %c0_i32 : i32, i32
  }
}

</mosaic_0001>

<llo_original>
// kernel: _forward_jit.1
$region0: #{_forward_jit.1}
  #allocation0 [shape = 'u32[]', space=smem, size = 0x4, offset = 0x4, fixed_abs, tag = 'smem constant byte address 0x4 - core index']
  #allocation1 [shape = 'u32[144,128]{1,0:T(1,128)}', space=vmem, size = 0x12000, scoped, tag = 'internal scratch']
  #allocation2 [shape = 'f32[1,1]{1,0:T(1,128)S(1)}', space=vmem, size = 0x200, scoped, tag = 'scoped memory for _forward_jit.1']
  %s0 = inlined_call_operand.vmem [shape: f32[8,8], index: 0, kind: input, shape index: {}]
  %s1 = inlined_call_operand.vmem [shape: f32[1,512], index: 1, kind: input, shape index: {}]
  %s2 = inlined_call_operand.vmem [shape: f32[1,512], index: 2, kind: input, shape index: {}]
  %s3 = inlined_call_operand.vmem [shape: bf16[128,512], index: 3, kind: input, shape index: {}]
  %s4 = inlined_call_operand.vmem [shape: bf16[128,128], index: 4, kind: input, shape index: {}]
  %s5 = inlined_call_operand.vmem [shape: f32[1,128], index: 5, kind: input, shape index: {}]
  %s6 = inlined_call_operand.vmem [shape: f32[1,128], index: 6, kind: input, shape index: {}]
  %s7 = inlined_call_operand.<no memory space> [shape: f32[1,1], index: 7, kind: input, shape index: {}]
  %s8 = inlined_call_operand.vmem [shape: f32[8,128], index: 8, kind: input, shape index: {}, may-alias: {8,9}]
  %s9 = inlined_call_operand.vmem [shape: f32[8,128], index: 9, kind: input, shape index: {}, may-alias: {8,9}]
  %s10 = inlined_call_operand.vmem [shape: f32[8,1], index: 10, kind: output, shape index: {0}]
  %s11 = inlined_call_operand.vmem [shape: f32[8,128], index: 11, kind: output, shape index: {1}]
  %s12 = inlined_call_operand.vmem [shape: f32[8,128], index: 12, kind: output, shape index: {2}]
  %13 = xla_tuple %s10, %s11, %s12
  %s14 = sld [smem:[#allocation0]]
  $region66: #{_forward_jit.1} parent=0
    _
  %s16 = ssub.s32 1, %s14
  %s17 = scalar_select 0, %s16, %s14
  %v18 = vstv %s7
  %19 = vst [vmem:[#allocation2] sm:$0x1] %v18
  // Predicated region
  $region2: #{_forward_jit.1} parent=0 // pred_check
    _
  $region3: #{_forward_jit.1} parent=0 // pred_check_branch
    %21 = sbr.rel (0) target = $region5
  $region4: #{_forward_jit.1} parent=0 // pred_region
    _
  $region5: #{_forward_jit.1} parent=0 // pred_fallthru
    _
  // Predicated region
  $region6: #{_forward_jit.1} parent=0 // pred_check
    _
  $region7: #{_forward_jit.1} parent=0 // pred_check_branch
    %23 = sbr.rel (0) target = $region9
  $region8: #{_forward_jit.1} parent=0 // pred_region
    _
  $region9: #{_forward_jit.1} parent=0 // pred_fallthru
    _
  // Predicated region
  $region10: #{_forward_jit.1} parent=0 // pred_check
    _
  $region11: #{_forward_jit.1} parent=0 // pred_check_branch
    %25 = sbr.rel (0) target = $region13
  $region12: #{_forward_jit.1} parent=0 // pred_region
    _
  $region13: #{_forward_jit.1} parent=0 // pred_fallthru
    _
  // Predicated region
  $region14: #{_forward_jit.1} parent=0 // pred_check
    _
  $region15: #{_forward_jit.1} parent=0 // pred_check_branch
    %27 = sbr.rel (0) target = $region17
  $region16: #{_forward_jit.1} parent=0 // pred_region
    _
  $region17: #{_forward_jit.1} parent=0 // pred_fallthru
    _
  // Predicated region
  $region18: #{_forward_jit.1} parent=0 // pred_check
    _
  $region19: #{_forward_jit.1} parent=0 // pred_check_branch
    %29 = sbr.rel (0) target = $region21
  $region20: #{_forward_jit.1} parent=0 // pred_region
    _
  $region21: #{_forward_jit.1} parent=0 // pred_fallthru
    _
  // Predicated region
  $region22: #{_forward_jit.1} parent=0 // pred_check
    _
  $region23: #{_forward_jit.1} parent=0 // pred_check_branch
    %31 = sbr.rel (0) target = $region25
  $region24: #{_forward_jit.1} parent=0 // pred_region
    _
  $region25: #{_forward_jit.1} parent=0 // pred_fallthru
    _
  // Predicated region
  $region26: #{_forward_jit.1} parent=0 // pred_check
    _
  $region27: #{_forward_jit.1} parent=0 // pred_check_branch
    %33 = sbr.rel (0) target = $region29
  $region28: #{_forward_jit.1} parent=0 // pred_region
    _
  $region29: #{_forward_jit.1} parent=0 // pred_fallthru
    _
  // Predicated region
  $region30: #{_forward_jit.1} parent=0 // pred_check
    _
  $region31: #{_forward_jit.1} parent=0 // pred_check_branch
    %35 = sbr.rel (0) target = $region33
  $region32: #{_forward_jit.1} parent=0 // pred_region
    _
  $region33: #{_forward_jit.1} parent=0 // pred_fallthru
    _
  // Predicated region
  $region34: #{_forward_jit.1} parent=0 // pred_check
    _
  $region35: #{_forward_jit.1} parent=0 // pred_check_branch
    %37 = sbr.rel (0) target = $region37
  $region36: #{_forward_jit.1} parent=0 // pred_region
    _
  $region37: #{_forward_jit.1} parent=0 // pred_fallthru
    _
  // Predicated region
  $region38: #{_forward_jit.1} parent=0 // pred_check
    _
  $region39: #{_forward_jit.1} parent=0 // pred_check_branch
    %39 = sbr.rel (0) target = $region41
  $region40: #{_forward_jit.1} parent=0 // pred_region
    _
  $region41: #{_forward_jit.1} parent=0 // pred_fallthru
    _
  %v41 = vld [vmem:[%s0] sm:$0xff]
  %v42 = vlaneseq
  %v43 = vand.u32 %v42, 127
  %v44 = vld [vmem:[%s8] sm:$0xff]
  %v45 = vld [vmem:[%s9] sm:$0xff]
  %vm46 = vcmp.eq.s32.totalorder %v43, 0
  %v47 = vsel %vm46, %v41, 0.0
  %vm48 = vcmask 64512
  %v49 = vsel %vm48, %v47, 0.0
  %50 = vadd.xlane.f32.xlu0 %v49
  %v51 = vpop.xlane.xlu0 %50
  %v52 = vld [vmem:[%s1] sm:$0xf]
  %v54 = vlaneseq
  %v55 = vshrl.u32 %v54, 7
  %v56 = vsub.s32 0, %v55
  %v57 = vrot.slane %v52, %v56
  %v58 = vlaneseq
  %v59 = vshrl.u32 %v58, 7
  %v60 = vsub.s32 1, %v59
  %v61 = vrot.slane %v52, %v60
  %v62 = vlaneseq
  %v63 = vshrl.u32 %v62, 7
  %v64 = vsub.s32 2, %v63
  %v65 = vrot.slane %v52, %v64
  %v66 = vlaneseq
  %v67 = vshrl.u32 %v66, 7
  %v68 = vsub.s32 3, %v67
  %v69 = vrot.slane %v52, %v68
  %v74 = vmul.f32 %v51, %v57
  %v75 = vmul.f32 %v51, %v61
  %v76 = vmul.f32 %v51, %v65
  %v77 = vmul.f32 %v51, %v69
  %v78 = vld [vmem:[%s2] sm:$0xf]
  %v80 = vlaneseq
  %v81 = vshrl.u32 %v80, 7
  %v82 = vsub.s32 0, %v81
  %v83 = vrot.slane %v78, %v82
  %v84 = vlaneseq
  %v85 = vshrl.u32 %v84, 7
  %v86 = vsub.s32 1, %v85
  %v87 = vrot.slane %v78, %v86
  %v88 = vlaneseq
  %v89 = vshrl.u32 %v88, 7
  %v90 = vsub.s32 2, %v89
  %v91 = vrot.slane %v78, %v90
  %v92 = vlaneseq
  %v93 = vshrl.u32 %v92, 7
  %v94 = vsub.s32 3, %v93
  %v95 = vrot.slane %v78, %v94
  %v100 = vadd.f32 %v74, %v83
  %v101 = vadd.f32 %v75, %v87
  %v102 = vadd.f32 %v76, %v91
  %v103 = vadd.f32 %v77, %v95
  %v104 = vpack.c.bf16 %v44, %v44
  %v105 = vld [vmem:[%s3] sm:$0xff]
  %v106 = vld [vmem:[%s3 + $0x8] sm:$0xff]
  %v107 = vld [vmem:[%s3 + $0x10] sm:$0xff]
  %v108 = vld [vmem:[%s3 + $0x18] sm:$0xff]
  %v109 = vld [vmem:[%s3 + $0x20] sm:$0xff]
  %v110 = vld [vmem:[%s3 + $0x28] sm:$0xff]
  %v111 = vld [vmem:[%s3 + $0x30] sm:$0xff]
  %v112 = vld [vmem:[%s3 + $0x38] sm:$0xff]
  %v113 = vld [vmem:[%s3 + $0x40] sm:$0xff]
  %v114 = vld [vmem:[%s3 + $0x48] sm:$0xff]
  %v115 = vld [vmem:[%s3 + $0x50] sm:$0xff]
  %v116 = vld [vmem:[%s3 + $0x58] sm:$0xff]
  %v117 = vld [vmem:[%s3 + $0x60] sm:$0xff]
  %v118 = vld [vmem:[%s3 + $0x68] sm:$0xff]
  %v119 = vld [vmem:[%s3 + $0x70] sm:$0xff]
  %v120 = vld [vmem:[%s3 + $0x78] sm:$0xff]
  %v121 = vld [vmem:[%s3 + $0x80] sm:$0xff]
  %v122 = vld [vmem:[%s3 + $0x88] sm:$0xff]
  %v123 = vld [vmem:[%s3 + $0x90] sm:$0xff]
  %v124 = vld [vmem:[%s3 + $0x98] sm:$0xff]
  %v125 = vld [vmem:[%s3 + $0xa0] sm:$0xff]
  %v126 = vld [vmem:[%s3 + $0xa8] sm:$0xff]
  %v127 = vld [vmem:[%s3 + $0xb0] sm:$0xff]
  %v128 = vld [vmem:[%s3 + $0xb8] sm:$0xff]
  %v129 = vld [vmem:[%s3 + $0xc0] sm:$0xff]
  %v130 = vld [vmem:[%s3 + $0xc8] sm:$0xff]
  %v131 = vld [vmem:[%s3 + $0xd0] sm:$0xff]
  %v132 = vld [vmem:[%s3 + $0xd8] sm:$0xff]
  %v133 = vld [vmem:[%s3 + $0xe0] sm:$0xff]
  %v134 = vld [vmem:[%s3 + $0xe8] sm:$0xff]
  %v135 = vld [vmem:[%s3 + $0xf0] sm:$0xff]
  %v136 = vld [vmem:[%s3 + $0xf8] sm:$0xff]
  %v169 = vunpack.c.l.b16 %v105
  %v170 = vunpack.c.h.b16 %v105
  %v171 = vunpack.c.l.b16 %v106
  %v172 = vunpack.c.h.b16 %v106
  %v173 = vunpack.c.l.b16 %v107
  %v174 = vunpack.c.h.b16 %v107
  %v175 = vunpack.c.l.b16 %v108
  %v176 = vunpack.c.h.b16 %v108
  %v177 = vunpack.c.l.b16 %v109
  %v178 = vunpack.c.h.b16 %v109
  %v179 = vunpack.c.l.b16 %v110
  %v180 = vunpack.c.h.b16 %v110
  %v181 = vunpack.c.l.b16 %v111
  %v182 = vunpack.c.h.b16 %v111
  %v183 = vunpack.c.l.b16 %v112
  %v184 = vunpack.c.h.b16 %v112
  %v185 = vunpack.c.l.b16 %v113
  %v186 = vunpack.c.h.b16 %v113
  %v187 = vunpack.c.l.b16 %v114
  %v188 = vunpack.c.h.b16 %v114
  %v189 = vunpack.c.l.b16 %v115
  %v190 = vunpack.c.h.b16 %v115
  %v191 = vunpack.c.l.b16 %v116
  %v192 = vunpack.c.h.b16 %v116
  %v193 = vunpack.c.l.b16 %v117
  %v194 = vunpack.c.h.b16 %v117
  %v195 = vunpack.c.l.b16 %v118
  %v196 = vunpack.c.h.b16 %v118
  %v197 = vunpack.c.l.b16 %v119
  %v198 = vunpack.c.h.b16 %v119
  %v199 = vunpack.c.l.b16 %v120
  %v200 = vunpack.c.h.b16 %v120
  %v201 = vunpack.c.l.b16 %v121
  %v202 = vunpack.c.h.b16 %v121
  %v203 = vunpack.c.l.b16 %v122
  %v204 = vunpack.c.h.b16 %v122
  %v205 = vunpack.c.l.b16 %v123
  %v206 = vunpack.c.h.b16 %v123
  %v207 = vunpack.c.l.b16 %v124
  %v208 = vunpack.c.h.b16 %v124
  %v209 = vunpack.c.l.b16 %v125
  %v210 = vunpack.c.h.b16 %v125
  %v211 = vunpack.c.l.b16 %v126
  %v212 = vunpack.c.h.b16 %v126
  %v213 = vunpack.c.l.b16 %v127
  %v214 = vunpack.c.h.b16 %v127
  %v215 = vunpack.c.l.b16 %v128
  %v216 = vunpack.c.h.b16 %v128
  %v217 = vunpack.c.l.b16 %v129
  %v218 = vunpack.c.h.b16 %v129
  %v219 = vunpack.c.l.b16 %v130
  %v220 = vunpack.c.h.b16 %v130
  %v221 = vunpack.c.l.b16 %v131
  %v222 = vunpack.c.h.b16 %v131
  %v223 = vunpack.c.l.b16 %v132
  %v224 = vunpack.c.h.b16 %v132
  %v225 = vunpack.c.l.b16 %v133
  %v226 = vunpack.c.h.b16 %v133
  %v227 = vunpack.c.l.b16 %v134
  %v228 = vunpack.c.h.b16 %v134
  %v229 = vunpack.c.l.b16 %v135
  %v230 = vunpack.c.h.b16 %v135
  %v231 = vunpack.c.l.b16 %v136
  %v232 = vunpack.c.h.b16 %v136
  %v233 = vpack.c.b16 %v173, %v169
  %v234 = vpack.c.b16 %v174, %v170
  %v235 = vpack.c.b16 %v175, %v171
  %v236 = vpack.c.b16 %v176, %v172
  %v237 = vpack.c.b16 %v181, %v177
  %v238 = vpack.c.b16 %v182, %v178
  %v239 = vpack.c.b16 %v183, %v179
  %v240 = vpack.c.b16 %v184, %v180
  %v241 = vpack.c.b16 %v189, %v185
  %v242 = vpack.c.b16 %v190, %v186
  %v243 = vpack.c.b16 %v191, %v187
  %v244 = vpack.c.b16 %v192, %v188
  %v245 = vpack.c.b16 %v197, %v193
  %v246 = vpack.c.b16 %v198, %v194
  %v247 = vpack.c.b16 %v199, %v195
  %v248 = vpack.c.b16 %v200, %v196
  %v249 = vpack.c.b16 %v205, %v201
  %v250 = vpack.c.b16 %v206, %v202
  %v251 = vpack.c.b16 %v207, %v203
  %v252 = vpack.c.b16 %v208, %v204
  %v253 = vpack.c.b16 %v213, %v209
  %v254 = vpack.c.b16 %v214, %v210
  %v255 = vpack.c.b16 %v215, %v211
  %v256 = vpack.c.b16 %v216, %v212
  %v257 = vpack.c.b16 %v221, %v217
  %v258 = vpack.c.b16 %v222, %v218
  %v259 = vpack.c.b16 %v223, %v219
  %v260 = vpack.c.b16 %v224, %v220
  %v261 = vpack.c.b16 %v229, %v225
  %v262 = vpack.c.b16 %v230, %v226
  %v263 = vpack.c.b16 %v231, %v227
  %v264 = vpack.c.b16 %v232, %v228
  %297 = vmatprep.subr.bf16.mxu0 %v234
  %298 = vmatpush1.bf16.msra.mxu0 %v233
  %299 = vmatprep.subr.bf16.mxu0 %v238
  %300 = vmatpush1.bf16.msra.mxu0 %v237
  %301 = vmatprep.subr.bf16.mxu0 %v242
  %302 = vmatpush1.bf16.msra.mxu0 %v241
  %303 = vmatprep.subr.bf16.mxu0 %v246
  %304 = vmatpush1.bf16.msra.mxu0 %v245
  %305 = vmatprep.subr.bf16.mxu0 %v250
  %306 = vmatpush1.bf16.msra.mxu0 %v249
  %307 = vmatprep.subr.bf16.mxu0 %v254
  %308 = vmatpush1.bf16.msra.mxu0 %v253
  %309 = vmatprep.subr.bf16.mxu0 %v258
  %310 = vmatpush1.bf16.msra.mxu0 %v257
  %311 = vmatprep.subr.bf16.mxu0 %v262
  %312 = vmatpush1.bf16.msra.mxu0 %v261
  %313 = vmatprep.subr.bf16.mxu0 0
  %314 = vmatpush1.bf16.msra.mxu0 0
  %315 = vmatprep.subr.bf16.mxu0 0
  %316 = vmatpush1.bf16.msra.mxu0 0
  %317 = vmatprep.subr.bf16.mxu0 0
  %318 = vmatpush1.bf16.msra.mxu0 0
  %319 = vmatprep.subr.bf16.mxu0 0
  %320 = vmatpush1.bf16.msra.mxu0 0
  %321 = vmatprep.subr.bf16.mxu0 0
  %322 = vmatpush1.bf16.msra.mxu0 0
  %323 = vmatprep.subr.bf16.mxu0 0
  %324 = vmatpush1.bf16.msra.mxu0 0
  %325 = vmatprep.subr.bf16.mxu0 0
  %326 = vmatpush1.bf16.msra.mxu0 0
  %327 = vmatprep.subr.bf16.mxu0 0
  %328 = vmatpush1.bf16.msra.mxu0 0
  %329 = vmatprep.mubr.bf16.mxu0 0
  %330 = vmatmul.mubr.bf16.gmra.mrb[0].mxu0 %v104
  %v331 = vpop.f32.mrb[0].mxu0
  %v332 = vadd.f32 0.0, %v331
  %v333 = vpop.f32.mrb[0].mxu0
  %v334 = vadd.f32 0.0, %v333
  %v335 = vpop.f32.mrb[0].mxu0
  %v336 = vpop.f32.mrb[0].mxu0
  %337 = vdwg.mxu0
  %338 = vmatprep.subr.bf16.mxu0 %v236
  %339 = vmatpush1.bf16.msra.mxu0 %v235
  %340 = vmatprep.subr.bf16.mxu0 %v240
  %341 = vmatpush1.bf16.msra.mxu0 %v239
  %342 = vmatprep.subr.bf16.mxu0 %v244
  %343 = vmatpush1.bf16.msra.mxu0 %v243
  %344 = vmatprep.subr.bf16.mxu0 %v248
  %345 = vmatpush1.bf16.msra.mxu0 %v247
  %346 = vmatprep.subr.bf16.mxu0 %v252
  %347 = vmatpush1.bf16.msra.mxu0 %v251
  %348 = vmatprep.subr.bf16.mxu0 %v256
  %349 = vmatpush1.bf16.msra.mxu0 %v255
  %350 = vmatprep.subr.bf16.mxu0 %v260
  %351 = vmatpush1.bf16.msra.mxu0 %v259
  %352 = vmatprep.subr.bf16.mxu0 %v264
  %353 = vmatpush1.bf16.msra.mxu0 %v263
  %354 = vmatprep.subr.bf16.mxu0 0
  %355 = vmatpush1.bf16.msra.mxu0 0
  %356 = vmatprep.subr.bf16.mxu0 0
  %357 = vmatpush1.bf16.msra.mxu0 0
  %358 = vmatprep.subr.bf16.mxu0 0
  %359 = vmatpush1.bf16.msra.mxu0 0
  %360 = vmatprep.subr.bf16.mxu0 0
  %361 = vmatpush1.bf16.msra.mxu0 0
  %362 = vmatprep.subr.bf16.mxu0 0
  %363 = vmatpush1.bf16.msra.mxu0 0
  %364 = vmatprep.subr.bf16.mxu0 0
  %365 = vmatpush1.bf16.msra.mxu0 0
  %366 = vmatprep.subr.bf16.mxu0 0
  %367 = vmatpush1.bf16.msra.mxu0 0
  %368 = vmatprep.subr.bf16.mxu0 0
  %369 = vmatpush1.bf16.msra.mxu0 0
  %370 = vmatprep.mubr.bf16.mxu0 0
  %371 = vmatmul.mubr.bf16.gmra.mrb[0].mxu0 %v104
  %v372 = vpop.f32.mrb[0].mxu0
  %v373 = vadd.f32 0.0, %v372
  %v374 = vpop.f32.mrb[0].mxu0
  %v375 = vadd.f32 0.0, %v374
  %v376 = vpop.f32.mrb[0].mxu0
  %v377 = vpop.f32.mrb[0].mxu0
  %378 = vdwg.mxu0
  %v379 = vadd.f32 %v100, %v332
  %v380 = vadd.f32 %v101, %v334
  %v381 = vadd.f32 %v102, %v373
  %v382 = vadd.f32 %v103, %v375
  %v383 = vxor.u32 %v379, 2147483648
  %v384 = vmul.f32 %v383, 1.442695
  %v385 = vpow.pop %v384
  %v386 = vadd.f32 %v385, 1.0
  %v387 = vrcp.pop %v386
  %v388 = vmul.f32 1.0, %v387
  %v389 = vxor.u32 %v380, 2147483648
  %v390 = vmul.f32 %v389, 1.442695
  %v391 = vpow.pop %v390
  %v392 = vadd.f32 %v391, 1.0
  %v393 = vrcp.pop %v392
  %v394 = vmul.f32 1.0, %v393
  %v395 = vtanh.pop %v381
  %v396 = vxor.u32 %v382, 2147483648
  %v397 = vmul.f32 %v396, 1.442695
  %v398 = vpow.pop %v397
  %v399 = vadd.f32 %v398, 1.0
  %v400 = vrcp.pop %v399
  %v401 = vmul.f32 1.0, %v400
  %v402 = vmul.f32 %v394, %v45
  %v403 = vmul.f32 %v388, %v395
  %v404 = vadd.f32 %v402, %v403
  %v405 = vtanh.pop %v404
  %v406 = vmul.f32 %v401, %v405
  %vm407 = vcmp.eq.s32.totalorder %v43, 1
  %v408 = vsel %vm407, %v41, 0.0
  %v409 = vsel %vm48, %v408, 0.0
  %410 = vadd.xlane.f32.xlu0 %v409
  %v411 = vpop.xlane.xlu0 %410
  %v412 = vmul.f32 %v411, %v57
  %v413 = vmul.f32 %v411, %v61
  %v414 = vmul.f32 %v411, %v65
  %v415 = vmul.f32 %v411, %v69
  %v416 = vadd.f32 %v412, %v83
  %v417 = vadd.f32 %v413, %v87
  %v418 = vadd.f32 %v414, %v91
  %v419 = vadd.f32 %v415, %v95
  %v420 = vpack.c.bf16 %v406, %v406
  %421 = vmatprep.subr.bf16.mxu0 %v234
  %422 = vmatpush1.bf16.msra.mxu0 %v233
  %423 = vmatprep.subr.bf16.mxu0 %v238
  %424 = vmatpush1.bf16.msra.mxu0 %v237
  %425 = vmatprep.subr.bf16.mxu0 %v242
  %426 = vmatpush1.bf16.msra.mxu0 %v241
  %427 = vmatprep.subr.bf16.mxu0 %v246
  %428 = vmatpush1.bf16.msra.mxu0 %v245
  %429 = vmatprep.subr.bf16.mxu0 %v250
  %430 = vmatpush1.bf16.msra.mxu0 %v249
  %431 = vmatprep.subr.bf16.mxu0 %v254
  %432 = vmatpush1.bf16.msra.mxu0 %v253
  %433 = vmatprep.subr.bf16.mxu0 %v258
  %434 = vmatpush1.bf16.msra.mxu0 %v257
  %435 = vmatprep.subr.bf16.mxu0 %v262
  %436 = vmatpush1.bf16.msra.mxu0 %v261
  %437 = vmatprep.subr.bf16.mxu0 0
  %438 = vmatpush1.bf16.msra.mxu0 0
  %439 = vmatprep.subr.bf16.mxu0 0
  %440 = vmatpush1.bf16.msra.mxu0 0
  %441 = vmatprep.subr.bf16.mxu0 0
  %442 = vmatpush1.bf16.msra.mxu0 0
  %443 = vmatprep.subr.bf16.mxu0 0
  %444 = vmatpush1.bf16.msra.mxu0 0
  %445 = vmatprep.subr.bf16.mxu0 0
  %446 = vmatpush1.bf16.msra.mxu0 0
  %447 = vmatprep.subr.bf16.mxu0 0
  %448 = vmatpush1.bf16.msra.mxu0 0
  %449 = vmatprep.subr.bf16.mxu0 0
  %450 = vmatpush1.bf16.msra.mxu0 0
  %451 = vmatprep.subr.bf16.mxu0 0
  %452 = vmatpush1.bf16.msra.mxu0 0
  %453 = vmatprep.mubr.bf16.mxu0 0
  %454 = vmatmul.mubr.bf16.gmra.mrb[0].mxu0 %v420
  %v455 = vpop.f32.mrb[0].mxu0
  %v456 = vadd.f32 0.0, %v455
  %v457 = vpop.f32.mrb[0].mxu0
  %v458 = vadd.f32 0.0, %v457
  %v459 = vpop.f32.mrb[0].mxu0
  %v460 = vpop.f32.mrb[0].mxu0
  %461 = vdwg.mxu0
  %462 = vmatprep.subr.bf16.mxu0 %v236
  %463 = vmatpush1.bf16.msra.mxu0 %v235
  %464 = vmatprep.subr.bf16.mxu0 %v240
  %465 = vmatpush1.bf16.msra.mxu0 %v239
  %466 = vmatprep.subr.bf16.mxu0 %v244
  %467 = vmatpush1.bf16.msra.mxu0 %v243
  %468 = vmatprep.subr.bf16.mxu0 %v248
  %469 = vmatpush1.bf16.msra.mxu0 %v247
  %470 = vmatprep.subr.bf16.mxu0 %v252
  %471 = vmatpush1.bf16.msra.mxu0 %v251
  %472 = vmatprep.subr.bf16.mxu0 %v256
  %473 = vmatpush1.bf16.msra.mxu0 %v255
  %474 = vmatprep.subr.bf16.mxu0 %v260
  %475 = vmatpush1.bf16.msra.mxu0 %v259
  %476 = vmatprep.subr.bf16.mxu0 %v264
  %477 = vmatpush1.bf16.msra.mxu0 %v263
  %478 = vmatprep.subr.bf16.mxu0 0
  %479 = vmatpush1.bf16.msra.mxu0 0
  %480 = vmatprep.subr.bf16.mxu0 0
  %481 = vmatpush1.bf16.msra.mxu0 0
  %482 = vmatprep.subr.bf16.mxu0 0
  %483 = vmatpush1.bf16.msra.mxu0 0
  %484 = vmatprep.subr.bf16.mxu0 0
  %485 = vmatpush1.bf16.msra.mxu0 0
  %486 = vmatprep.subr.bf16.mxu0 0
  %487 = vmatpush1.bf16.msra.mxu0 0
  %488 = vmatprep.subr.bf16.mxu0 0
  %489 = vmatpush1.bf16.msra.mxu0 0
  %490 = vmatprep.subr.bf16.mxu0 0
  %491 = vmatpush1.bf16.msra.mxu0 0
  %492 = vmatprep.subr.bf16.mxu0 0
  %493 = vmatpush1.bf16.msra.mxu0 0
  %494 = vmatprep.mubr.bf16.mxu0 0
  %495 = vmatmul.mubr.bf16.gmra.mrb[0].mxu0 %v420
  %v496 = vpop.f32.mrb[0].mxu0
  %v497 = vadd.f32 0.0, %v496
  %v498 = vpop.f32.mrb[0].mxu0
  %v499 = vadd.f32 0.0, %v498
  %v500 = vpop.f32.mrb[0].mxu0
  %v501 = vpop.f32.mrb[0].mxu0
  %502 = vdwg.mxu0
  %v503 = vadd.f32 %v416, %v456
  %v504 = vadd.f32 %v417, %v458
  %v505 = vadd.f32 %v418, %v497
  %v506 = vadd.f32 %v419, %v499
  %v507 = vxor.u32 %v503, 2147483648
  %v508 = vmul.f32 %v507, 1.442695
  %v509 = vpow.pop %v508
  %v510 = vadd.f32 %v509, 1.0
  %v511 = vrcp.pop %v510
  %v512 = vmul.f32 1.0, %v511
  %v513 = vxor.u32 %v504, 2147483648
  %v514 = vmul.f32 %v513, 1.442695
  %v515 = vpow.pop %v514
  %v516 = vadd.f32 %v515, 1.0
  %v517 = vrcp.pop %v516
  %v518 = vmul.f32 1.0, %v517
  %v519 = vtanh.pop %v505
  %v520 = vxor.u32 %v506, 2147483648
  %v521 = vmul.f32 %v520, 1.442695
  %v522 = vpow.pop %v521
  %v523 = vadd.f32 %v522, 1.0
  %v524 = vrcp.pop %v523
  %v525 = vmul.f32 1.0, %v524
  %v526 = vmul.f32 %v518, %v404
  %v527 = vmul.f32 %v512, %v519
  %v528 = vadd.f32 %v526, %v527
  %v529 = vtanh.pop %v528
  %v530 = vmul.f32 %v525, %v529
  %vm531 = vcmp.eq.s32.totalorder %v43, 2
  %v532 = vsel %vm531, %v41, 0.0
  %v533 = vsel %vm48, %v532, 0.0
  %534 = vadd.xlane.f32.xlu0 %v533
  %v535 = vpop.xlane.xlu0 %534
  %v536 = vmul.f32 %v535, %v57
  %v537 = vmul.f32 %v535, %v61
  %v538 = vmul.f32 %v535, %v65
  %v539 = vmul.f32 %v535, %v69
  %v540 = vadd.f32 %v536, %v83
  %v541 = vadd.f32 %v537, %v87
  %v542 = vadd.f32 %v538, %v91
  %v543 = vadd.f32 %v539, %v95
  %v544 = vpack.c.bf16 %v530, %v530
  %545 = vmatprep.subr.bf16.mxu0 %v234
  %546 = vmatpush1.bf16.msra.mxu0 %v233
  %547 = vmatprep.subr.bf16.mxu0 %v238
  %548 = vmatpush1.bf16.msra.mxu0 %v237
  %549 = vmatprep.subr.bf16.mxu0 %v242
  %550 = vmatpush1.bf16.msra.mxu0 %v241
  %551 = vmatprep.subr.bf16.mxu0 %v246
  %552 = vmatpush1.bf16.msra.mxu0 %v245
  %553 = vmatprep.subr.bf16.mxu0 %v250
  %554 = vmatpush1.bf16.msra.mxu0 %v249
  %555 = vmatprep.subr.bf16.mxu0 %v254
  %556 = vmatpush1.bf16.msra.mxu0 %v253
  %557 = vmatprep.subr.bf16.mxu0 %v258
  %558 = vmatpush1.bf16.msra.mxu0 %v257
  %559 = vmatprep.subr.bf16.mxu0 %v262
  %560 = vmatpush1.bf16.msra.mxu0 %v261
  %561 = vmatprep.subr.bf16.mxu0 0
  %562 = vmatpush1.bf16.msra.mxu0 0
  %563 = vmatprep.subr.bf16.mxu0 0
  %564 = vmatpush1.bf16.msra.mxu0 0
  %565 = vmatprep.subr.bf16.mxu0 0
  %566 = vmatpush1.bf16.msra.mxu0 0
  %567 = vmatprep.subr.bf16.mxu0 0
  %568 = vmatpush1.bf16.msra.mxu0 0
  %569 = vmatprep.subr.bf16.mxu0 0
  %570 = vmatpush1.bf16.msra.mxu0 0
  %571 = vmatprep.subr.bf16.mxu0 0
  %572 = vmatpush1.bf16.msra.mxu0 0
  %573 = vmatprep.subr.bf16.mxu0 0
  %574 = vmatpush1.bf16.msra.mxu0 0
  %575 = vmatprep.subr.bf16.mxu0 0
  %576 = vmatpush1.bf16.msra.mxu0 0
  %577 = vmatprep.mubr.bf16.mxu0 0
  %578 = vmatmul.mubr.bf16.gmra.mrb[0].mxu0 %v544
  %v579 = vpop.f32.mrb[0].mxu0
  %v580 = vadd.f32 0.0, %v579
  %v581 = vpop.f32.mrb[0].mxu0
  %v582 = vadd.f32 0.0, %v581
  %v583 = vpop.f32.mrb[0].mxu0
  %v584 = vpop.f32.mrb[0].mxu0
  %585 = vdwg.mxu0
  %586 = vmatprep.subr.bf16.mxu0 %v236
  %587 = vmatpush1.bf16.msra.mxu0 %v235
  %588 = vmatprep.subr.bf16.mxu0 %v240
  %589 = vmatpush1.bf16.msra.mxu0 %v239
  %590 = vmatprep.subr.bf16.mxu0 %v244
  %591 = vmatpush1.bf16.msra.mxu0 %v243
  %592 = vmatprep.subr.bf16.mxu0 %v248
  %593 = vmatpush1.bf16.msra.mxu0 %v247
  %594 = vmatprep.subr.bf16.mxu0 %v252
  %595 = vmatpush1.bf16.msra.mxu0 %v251
  %596 = vmatprep.subr.bf16.mxu0 %v256
  %597 = vmatpush1.bf16.msra.mxu0 %v255
  %598 = vmatprep.subr.bf16.mxu0 %v260
  %599 = vmatpush1.bf16.msra.mxu0 %v259
  %600 = vmatprep.subr.bf16.mxu0 %v264
  %601 = vmatpush1.bf16.msra.mxu0 %v263
  %602 = vmatprep.subr.bf16.mxu0 0
  %603 = vmatpush1.bf16.msra.mxu0 0
  %604 = vmatprep.subr.bf16.mxu0 0
  %605 = vmatpush1.bf16.msra.mxu0 0
  %606 = vmatprep.subr.bf16.mxu0 0
  %607 = vmatpush1.bf16.msra.mxu0 0
  %608 = vmatprep.subr.bf16.mxu0 0
  %609 = vmatpush1.bf16.msra.mxu0 0
  %610 = vmatprep.subr.bf16.mxu0 0
  %611 = vmatpush1.bf16.msra.mxu0 0
  %612 = vmatprep.subr.bf16.mxu0 0
  %613 = vmatpush1.bf16.msra.mxu0 0
  %614 = vmatprep.subr.bf16.mxu0 0
  %615 = vmatpush1.bf16.msra.mxu0 0
  %616 = vmatprep.subr.bf16.mxu0 0
  %617 = vmatpush1.bf16.msra.mxu0 0
  %618 = vmatprep.mubr.bf16.mxu0 0
  %619 = vmatmul.mubr.bf16.gmra.mrb[0].mxu0 %v544
  %v620 = vpop.f32.mrb[0].mxu0
  %v621 = vadd.f32 0.0, %v620
  %v622 = vpop.f32.mrb[0].mxu0
  %v623 = vadd.f32 0.0, %v622
  %v624 = vpop.f32.mrb[0].mxu0
  %v625 = vpop.f32.mrb[0].mxu0
  %626 = vdwg.mxu0
  %v627 = vadd.f32 %v540, %v580
  %v628 = vadd.f32 %v541, %v582
  %v629 = vadd.f32 %v542, %v621
  %v630 = vadd.f32 %v543, %v623
  %v631 = vxor.u32 %v627, 2147483648
  %v632 = vmul.f32 %v631, 1.442695
  %v633 = vpow.pop %v632
  %v634 = vadd.f32 %v633, 1.0
  %v635 = vrcp.pop %v634
  %v636 = vmul.f32 1.0, %v635
  %v637 = vxor.u32 %v628, 2147483648
  %v638 = vmul.f32 %v637, 1.442695
  %v639 = vpow.pop %v638
  %v640 = vadd.f32 %v639, 1.0
  %v641 = vrcp.pop %v640
  %v642 = vmul.f32 1.0, %v641
  %v643 = vtanh.pop %v629
  %v644 = vxor.u32 %v630, 2147483648
  %v645 = vmul.f32 %v644, 1.442695
  %v646 = vpow.pop %v645
  %v647 = vadd.f32 %v646, 1.0
  %v648 = vrcp.pop %v647
  %v649 = vmul.f32 1.0, %v648
  %v650 = vmul.f32 %v642, %v528
  %v651 = vmul.f32 %v636, %v643
  %v652 = vadd.f32 %v650, %v651
  %v653 = vtanh.pop %v652
  %v654 = vmul.f32 %v649, %v653
  %vm655 = vcmp.eq.s32.totalorder %v43, 3
  %v656 = vsel %vm655, %v41, 0.0
  %v657 = vsel %vm48, %v656, 0.0
  %658 = vadd.xlane.f32.xlu0 %v657
  %v659 = vpop.xlane.xlu0 %658
  %v660 = vmul.f32 %v659, %v57
  %v661 = vmul.f32 %v659, %v61
  %v662 = vmul.f32 %v659, %v65
  %v663 = vmul.f32 %v659, %v69
  %v664 = vadd.f32 %v660, %v83
  %v665 = vadd.f32 %v661, %v87
  %v666 = vadd.f32 %v662, %v91
  %v667 = vadd.f32 %v663, %v95
  %v668 = vpack.c.bf16 %v654, %v654
  %669 = vmatprep.subr.bf16.mxu0 %v234
  %670 = vmatpush1.bf16.msra.mxu0 %v233
  %671 = vmatprep.subr.bf16.mxu0 %v238
  %672 = vmatpush1.bf16.msra.mxu0 %v237
  %673 = vmatprep.subr.bf16.mxu0 %v242
  %674 = vmatpush1.bf16.msra.mxu0 %v241
  %675 = vmatprep.subr.bf16.mxu0 %v246
  %676 = vmatpush1.bf16.msra.mxu0 %v245
  %677 = vmatprep.subr.bf16.mxu0 %v250
  %678 = vmatpush1.bf16.msra.mxu0 %v249
  %679 = vmatprep.subr.bf16.mxu0 %v254
  %680 = vmatpush1.bf16.msra.mxu0 %v253
  %681 = vmatprep.subr.bf16.mxu0 %v258
  %682 = vmatpush1.bf16.msra.mxu0 %v257
  %683 = vmatprep.subr.bf16.mxu0 %v262
  %684 = vmatpush1.bf16.msra.mxu0 %v261
  %685 = vmatprep.subr.bf16.mxu0 0
  %686 = vmatpush1.bf16.msra.mxu0 0
  %687 = vmatprep.subr.bf16.mxu0 0
  %688 = vmatpush1.bf16.msra.mxu0 0
  %689 = vmatprep.subr.bf16.mxu0 0
  %690 = vmatpush1.bf16.msra.mxu0 0
  %691 = vmatprep.subr.bf16.mxu0 0
  %692 = vmatpush1.bf16.msra.mxu0 0
  %693 = vmatprep.subr.bf16.mxu0 0
  %694 = vmatpush1.bf16.msra.mxu0 0
  %695 = vmatprep.subr.bf16.mxu0 0
  %696 = vmatpush1.bf16.msra.mxu0 0
  %697 = vmatprep.subr.bf16.mxu0 0
  %698 = vmatpush1.bf16.msra.mxu0 0
  %699 = vmatprep.subr.bf16.mxu0 0
  %700 = vmatpush1.bf16.msra.mxu0 0
  %701 = vmatprep.mubr.bf16.mxu0 0
  %702 = vmatmul.mubr.bf16.gmra.mrb[0].mxu0 %v668
  %v703 = vpop.f32.mrb[0].mxu0
  %v704 = vadd.f32 0.0, %v703
  %v705 = vpop.f32.mrb[0].mxu0
  %v706 = vadd.f32 0.0, %v705
  %v707 = vpop.f32.mrb[0].mxu0
  %v708 = vpop.f32.mrb[0].mxu0
  %709 = vdwg.mxu0
  %710 = vmatprep.subr.bf16.mxu0 %v236
  %711 = vmatpush1.bf16.msra.mxu0 %v235
  %712 = vmatprep.subr.bf16.mxu0 %v240
  %713 = vmatpush1.bf16.msra.mxu0 %v239
  %714 = vmatprep.subr.bf16.mxu0 %v244
  %715 = vmatpush1.bf16.msra.mxu0 %v243
  %716 = vmatprep.subr.bf16.mxu0 %v248
  %717 = vmatpush1.bf16.msra.mxu0 %v247
  %718 = vmatprep.subr.bf16.mxu0 %v252
  %719 = vmatpush1.bf16.msra.mxu0 %v251
  %720 = vmatprep.subr.bf16.mxu0 %v256
  %721 = vmatpush1.bf16.msra.mxu0 %v255
  %722 = vmatprep.subr.bf16.mxu0 %v260
  %723 = vmatpush1.bf16.msra.mxu0 %v259
  %724 = vmatprep.subr.bf16.mxu0 %v264
  %725 = vmatpush1.bf16.msra.mxu0 %v263
  %726 = vmatprep.subr.bf16.mxu0 0
  %727 = vmatpush1.bf16.msra.mxu0 0
  %728 = vmatprep.subr.bf16.mxu0 0
  %729 = vmatpush1.bf16.msra.mxu0 0
  %730 = vmatprep.subr.bf16.mxu0 0
  %731 = vmatpush1.bf16.msra.mxu0 0
  %732 = vmatprep.subr.bf16.mxu0 0
  %733 = vmatpush1.bf16.msra.mxu0 0
  %734 = vmatprep.subr.bf16.mxu0 0
  %735 = vmatpush1.bf16.msra.mxu0 0
  %736 = vmatprep.subr.bf16.mxu0 0
  %737 = vmatpush1.bf16.msra.mxu0 0
  %738 = vmatprep.subr.bf16.mxu0 0
  %739 = vmatpush1.bf16.msra.mxu0 0
  %740 = vmatprep.subr.bf16.mxu0 0
  %741 = vmatpush1.bf16.msra.mxu0 0
  %742 = vmatprep.mubr.bf16.mxu0 0
  %743 = vmatmul.mubr.bf16.gmra.mrb[0].mxu0 %v668
  %v744 = vpop.f32.mrb[0].mxu0
  %v745 = vadd.f32 0.0, %v744
  %v746 = vpop.f32.mrb[0].mxu0
  %v747 = vadd.f32 0.0, %v746
  %v748 = vpop.f32.mrb[0].mxu0
  %v749 = vpop.f32.mrb[0].mxu0
  %750 = vdwg.mxu0
  %v751 = vadd.f32 %v664, %v704
  %v752 = vadd.f32 %v665, %v706
  %v753 = vadd.f32 %v666, %v745
  %v754 = vadd.f32 %v667, %v747
  %v755 = vxor.u32 %v751, 2147483648
  %v756 = vmul.f32 %v755, 1.442695
  %v757 = vpow.pop %v756
  %v758 = vadd.f32 %v757, 1.0
  %v759 = vrcp.pop %v758
  %v760 = vmul.f32 1.0, %v759
  %v761 = vxor.u32 %v752, 2147483648
  %v762 = vmul.f32 %v761, 1.442695
  %v763 = vpow.pop %v762
  %v764 = vadd.f32 %v763, 1.0
  %v765 = vrcp.pop %v764
  %v766 = vmul.f32 1.0, %v765
  %v767 = vtanh.pop %v753
  %v768 = vxor.u32 %v754, 2147483648
  %v769 = vmul.f32 %v768, 1.442695
  %v770 = vpow.pop %v769
  %v771 = vadd.f32 %v770, 1.0
  %v772 = vrcp.pop %v771
  %v773 = vmul.f32 1.0, %v772
  %v774 = vmul.f32 %v766, %v652
  %v775 = vmul.f32 %v760, %v767
  %v776 = vadd.f32 %v774, %v775
  %v777 = vtanh.pop %v776
  %v778 = vmul.f32 %v773, %v777
  %vm779 = vcmp.eq.s32.totalorder %v43, 4
  %v780 = vsel %vm779, %v41, 0.0
  %v781 = vsel %vm48, %v780, 0.0
  %782 = vadd.xlane.f32.xlu0 %v781
  %v783 = vpop.xlane.xlu0 %782
  %v784 = vmul.f32 %v783, %v57
  %v785 = vmul.f32 %v783, %v61
  %v786 = vmul.f32 %v783, %v65
  %v787 = vmul.f32 %v783, %v69
  %v788 = vadd.f32 %v784, %v83
  %v789 = vadd.f32 %v785, %v87
  %v790 = vadd.f32 %v786, %v91
  %v791 = vadd.f32 %v787, %v95
  %v792 = vpack.c.bf16 %v778, %v778
  %793 = vmatprep.subr.bf16.mxu0 %v234
  %794 = vmatpush1.bf16.msra.mxu0 %v233
  %795 = vmatprep.subr.bf16.mxu0 %v238
  %796 = vmatpush1.bf16.msra.mxu0 %v237
  %797 = vmatprep.subr.bf16.mxu0 %v242
  %798 = vmatpush1.bf16.msra.mxu0 %v241
  %799 = vmatprep.subr.bf16.mxu0 %v246
  %800 = vmatpush1.bf16.msra.mxu0 %v245
  %801 = vmatprep.subr.bf16.mxu0 %v250
  %802 = vmatpush1.bf16.msra.mxu0 %v249
  %803 = vmatprep.subr.bf16.mxu0 %v254
  %804 = vmatpush1.bf16.msra.mxu0 %v253
  %805 = vmatprep.subr.bf16.mxu0 %v258
  %806 = vmatpush1.bf16.msra.mxu0 %v257
  %807 = vmatprep.subr.bf16.mxu0 %v262
  %808 = vmatpush1.bf16.msra.mxu0 %v261
  %809 = vmatprep.subr.bf16.mxu0 0
  %810 = vmatpush1.bf16.msra.mxu0 0
  %811 = vmatprep.subr.bf16.mxu0 0
  %812 = vmatpush1.bf16.msra.mxu0 0
  %813 = vmatprep.subr.bf16.mxu0 0
  %814 = vmatpush1.bf16.msra.mxu0 0
  %815 = vmatprep.subr.bf16.mxu0 0
  %816 = vmatpush1.bf16.msra.mxu0 0
  %817 = vmatprep.subr.bf16.mxu0 0
  %818 = vmatpush1.bf16.msra.mxu0 0
  %819 = vmatprep.subr.bf16.mxu0 0
  %820 = vmatpush1.bf16.msra.mxu0 0
  %821 = vmatprep.subr.bf16.mxu0 0
  %822 = vmatpush1.bf16.msra.mxu0 0
  %823 = vmatprep.subr.bf16.mxu0 0
  %824 = vmatpush1.bf16.msra.mxu0 0
  %825 = vmatprep.mubr.bf16.mxu0 0
  %826 = vmatmul.mubr.bf16.gmra.mrb[0].mxu0 %v792
  %v827 = vpop.f32.mrb[0].mxu0
  %v828 = vadd.f32 0.0, %v827
  %v829 = vpop.f32.mrb[0].mxu0
  %v830 = vadd.f32 0.0, %v829
  %v831 = vpop.f32.mrb[0].mxu0
  %v832 = vpop.f32.mrb[0].mxu0
  %833 = vdwg.mxu0
  %834 = vmatprep.subr.bf16.mxu0 %v236
  %835 = vmatpush1.bf16.msra.mxu0 %v235
  %836 = vmatprep.subr.bf16.mxu0 %v240
  %837 = vmatpush1.bf16.msra.mxu0 %v239
  %838 = vmatprep.subr.bf16.mxu0 %v244
  %839 = vmatpush1.bf16.msra.mxu0 %v243
  %840 = vmatprep.subr.bf16.mxu0 %v248
  %841 = vmatpush1.bf16.msra.mxu0 %v247
  %842 = vmatprep.subr.bf16.mxu0 %v252
  %843 = vmatpush1.bf16.msra.mxu0 %v251
  %844 = vmatprep.subr.bf16.mxu0 %v256
  %845 = vmatpush1.bf16.msra.mxu0 %v255
  %846 = vmatprep.subr.bf16.mxu0 %v260
  %847 = vmatpush1.bf16.msra.mxu0 %v259
  %848 = vmatprep.subr.bf16.mxu0 %v264
  %849 = vmatpush1.bf16.msra.mxu0 %v263
  %850 = vmatprep.subr.bf16.mxu0 0
  %851 = vmatpush1.bf16.msra.mxu0 0
  %852 = vmatprep.subr.bf16.mxu0 0
  %853 = vmatpush1.bf16.msra.mxu0 0
  %854 = vmatprep.subr.bf16.mxu0 0
  %855 = vmatpush1.bf16.msra.mxu0 0
  %856 = vmatprep.subr.bf16.mxu0 0
  %857 = vmatpush1.bf16.msra.mxu0 0
  %858 = vmatprep.subr.bf16.mxu0 0
  %859 = vmatpush1.bf16.msra.mxu0 0
  %860 = vmatprep.subr.bf16.mxu0 0
  %861 = vmatpush1.bf16.msra.mxu0 0
  %862 = vmatprep.subr.bf16.mxu0 0
  %863 = vmatpush1.bf16.msra.mxu0 0
  %864 = vmatprep.subr.bf16.mxu0 0
  %865 = vmatpush1.bf16.msra.mxu0 0
  %866 = vmatprep.mubr.bf16.mxu0 0
  %867 = vmatmul.mubr.bf16.gmra.mrb[0].mxu0 %v792
  %v868 = vpop.f32.mrb[0].mxu0
  %v869 = vadd.f32 0.0, %v868
  %v870 = vpop.f32.mrb[0].mxu0
  %v871 = vadd.f32 0.0, %v870
  %v872 = vpop.f32.mrb[0].mxu0
  %v873 = vpop.f32.mrb[0].mxu0
  %874 = vdwg.mxu0
  %v875 = vadd.f32 %v788, %v828
  %v876 = vadd.f32 %v789, %v830
  %v877 = vadd.f32 %v790, %v869
  %v878 = vadd.f32 %v791, %v871
  %v879 = vxor.u32 %v875, 2147483648
  %v880 = vmul.f32 %v879, 1.442695
  %v881 = vpow.pop %v880
  %v882 = vadd.f32 %v881, 1.0
  %v883 = vrcp.pop %v882
  %v884 = vmul.f32 1.0, %v883
  %v885 = vxor.u32 %v876, 2147483648
  %v886 = vmul.f32 %v885, 1.442695
  %v887 = vpow.pop %v886
  %v888 = vadd.f32 %v887, 1.0
  %v889 = vrcp.pop %v888
  %v890 = vmul.f32 1.0, %v889
  %v891 = vtanh.pop %v877
  %v892 = vxor.u32 %v878, 2147483648
  %v893 = vmul.f32 %v892, 1.442695
  %v894 = vpow.pop %v893
  %v895 = vadd.f32 %v894, 1.0
  %v896 = vrcp.pop %v895
  %v897 = vmul.f32 1.0, %v896
  %v898 = vmul.f32 %v890, %v776
  %v899 = vmul.f32 %v884, %v891
  %v900 = vadd.f32 %v898, %v899
  %v901 = vtanh.pop %v900
  %v902 = vmul.f32 %v897, %v901
  %vm903 = vcmp.eq.s32.totalorder %v43, 5
  %v904 = vsel %vm903, %v41, 0.0
  %v905 = vsel %vm48, %v904, 0.0
  %906 = vadd.xlane.f32.xlu0 %v905
  %v907 = vpop.xlane.xlu0 %906
  %v908 = vmul.f32 %v907, %v57
  %v909 = vmul.f32 %v907, %v61
  %v910 = vmul.f32 %v907, %v65
  %v911 = vmul.f32 %v907, %v69
  %v912 = vadd.f32 %v908, %v83
  %v913 = vadd.f32 %v909, %v87
  %v914 = vadd.f32 %v910, %v91
  %v915 = vadd.f32 %v911, %v95
  %v916 = vpack.c.bf16 %v902, %v902
  %917 = vmatprep.subr.bf16.mxu0 %v234
  %918 = vmatpush1.bf16.msra.mxu0 %v233
  %919 = vmatprep.subr.bf16.mxu0 %v238
  %920 = vmatpush1.bf16.msra.mxu0 %v237
  %921 = vmatprep.subr.bf16.mxu0 %v242
  %922 = vmatpush1.bf16.msra.mxu0 %v241
  %923 = vmatprep.subr.bf16.mxu0 %v246
  %924 = vmatpush1.bf16.msra.mxu0 %v245
  %925 = vmatprep.subr.bf16.mxu0 %v250
  %926 = vmatpush1.bf16.msra.mxu0 %v249
  %927 = vmatprep.subr.bf16.mxu0 %v254
  %928 = vmatpush1.bf16.msra.mxu0 %v253
  %929 = vmatprep.subr.bf16.mxu0 %v258
  %930 = vmatpush1.bf16.msra.mxu0 %v257
  %931 = vmatprep.subr.bf16.mxu0 %v262
  %932 = vmatpush1.bf16.msra.mxu0 %v261
  %933 = vmatprep.subr.bf16.mxu0 0
  %934 = vmatpush1.bf16.msra.mxu0 0
  %935 = vmatprep.subr.bf16.mxu0 0
  %936 = vmatpush1.bf16.msra.mxu0 0
  %937 = vmatprep.subr.bf16.mxu0 0
  %938 = vmatpush1.bf16.msra.mxu0 0
  %939 = vmatprep.subr.bf16.mxu0 0
  %940 = vmatpush1.bf16.msra.mxu0 0
  %941 = vmatprep.subr.bf16.mxu0 0
  %942 = vmatpush1.bf16.msra.mxu0 0
  %943 = vmatprep.subr.bf16.mxu0 0
  %944 = vmatpush1.bf16.msra.mxu0 0
  %945 = vmatprep.subr.bf16.mxu0 0
  %946 = vmatpush1.bf16.msra.mxu0 0
  %947 = vmatprep.subr.bf16.mxu0 0
  %948 = vmatpush1.bf16.msra.mxu0 0
  %949 = vmatprep.mubr.bf16.mxu0 0
  %950 = vmatmul.mubr.bf16.gmra.mrb[0].mxu0 %v916
  %v951 = vpop.f32.mrb[0].mxu0
  %v952 = vadd.f32 0.0, %v951
  %v953 = vpop.f32.mrb[0].mxu0
  %v954 = vadd.f32 0.0, %v953
  %v955 = vpop.f32.mrb[0].mxu0
  %v956 = vpop.f32.mrb[0].mxu0
  %957 = vdwg.mxu0
  %958 = vmatprep.subr.bf16.mxu0 %v236
  %959 = vmatpush1.bf16.msra.mxu0 %v235
  %960 = vmatprep.subr.bf16.mxu0 %v240
  %961 = vmatpush1.bf16.msra.mxu0 %v239
  %962 = vmatprep.subr.bf16.mxu0 %v244
  %963 = vmatpush1.bf16.msra.mxu0 %v243
  %964 = vmatprep.subr.bf16.mxu0 %v248
  %965 = vmatpush1.bf16.msra.mxu0 %v247
  %966 = vmatprep.subr.bf16.mxu0 %v252
  %967 = vmatpush1.bf16.msra.mxu0 %v251
  %968 = vmatprep.subr.bf16.mxu0 %v256
  %969 = vmatpush1.bf16.msra.mxu0 %v255
  %970 = vmatprep.subr.bf16.mxu0 %v260
  %971 = vmatpush1.bf16.msra.mxu0 %v259
  %972 = vmatprep.subr.bf16.mxu0 %v264
  %973 = vmatpush1.bf16.msra.mxu0 %v263
  %974 = vmatprep.subr.bf16.mxu0 0
  %975 = vmatpush1.bf16.msra.mxu0 0
  %976 = vmatprep.subr.bf16.mxu0 0
  %977 = vmatpush1.bf16.msra.mxu0 0
  %978 = vmatprep.subr.bf16.mxu0 0
  %979 = vmatpush1.bf16.msra.mxu0 0
  %980 = vmatprep.subr.bf16.mxu0 0
  %981 = vmatpush1.bf16.msra.mxu0 0
  %982 = vmatprep.subr.bf16.mxu0 0
  %983 = vmatpush1.bf16.msra.mxu0 0
  %984 = vmatprep.subr.bf16.mxu0 0
  %985 = vmatpush1.bf16.msra.mxu0 0
  %986 = vmatprep.subr.bf16.mxu0 0
  %987 = vmatpush1.bf16.msra.mxu0 0
  %988 = vmatprep.subr.bf16.mxu0 0
  %989 = vmatpush1.bf16.msra.mxu0 0
  %990 = vmatprep.mubr.bf16.mxu0 0
  %991 = vmatmul.mubr.bf16.gmra.mrb[0].mxu0 %v916
  %v992 = vpop.f32.mrb[0].mxu0
  %v993 = vadd.f32 0.0, %v992
  %v994 = vpop.f32.mrb[0].mxu0
  %v995 = vadd.f32 0.0, %v994
  %v996 = vpop.f32.mrb[0].mxu0
  %v997 = vpop.f32.mrb[0].mxu0
  %998 = vdwg.mxu0
  %v999 = vadd.f32 %v912, %v952
  %v1000 = vadd.f32 %v913, %v954
  %v1001 = vadd.f32 %v914, %v993
  %v1002 = vadd.f32 %v915, %v995
  %v1003 = vxor.u32 %v999, 2147483648
  %v1004 = vmul.f32 %v1003, 1.442695
  %v1005 = vpow.pop %v1004
  %v1006 = vadd.f32 %v1005, 1.0
  %v1007 = vrcp.pop %v1006
  %v1008 = vmul.f32 1.0, %v1007
  %v1009 = vxor.u32 %v1000, 2147483648
  %v1010 = vmul.f32 %v1009, 1.442695
  %v1011 = vpow.pop %v1010
  %v1012 = vadd.f32 %v1011, 1.0
  %v1013 = vrcp.pop %v1012
  %v1014 = vmul.f32 1.0, %v1013
  %v1015 = vtanh.pop %v1001
  %v1016 = vxor.u32 %v1002, 2147483648
  %v1017 = vmul.f32 %v1016, 1.442695
  %v1018 = vpow.pop %v1017
  %v1019 = vadd.f32 %v1018, 1.0
  %v1020 = vrcp.pop %v1019
  %v1021 = vmul.f32 1.0, %v1020
  %v1022 = vmul.f32 %v1014, %v900
  %v1023 = vmul.f32 %v1008, %v1015
  %v1024 = vadd.f32 %v1022, %v1023
  %v1025 = vtanh.pop %v1024
  %v1026 = vmul.f32 %v1021, %v1025
  %vm1027 = vcmp.eq.s32.totalorder %v43, 6
  %v1028 = vsel %vm1027, %v41, 0.0
  %v1029 = vsel %vm48, %v1028, 0.0
  %1030 = vadd.xlane.f32.xlu0 %v1029
  %v1031 = vpop.xlane.xlu0 %1030
  %v1032 = vmul.f32 %v1031, %v57
  %v1033 = vmul.f32 %v1031, %v61
  %v1034 = vmul.f32 %v1031, %v65
  %v1035 = vmul.f32 %v1031, %v69
  %v1036 = vadd.f32 %v1032, %v83
  %v1037 = vadd.f32 %v1033, %v87
  %v1038 = vadd.f32 %v1034, %v91
  %v1039 = vadd.f32 %v1035, %v95
  %v1040 = vpack.c.bf16 %v1026, %v1026
  %1041 = vmatprep.subr.bf16.mxu0 %v234
  %1042 = vmatpush1.bf16.msra.mxu0 %v233
  %1043 = vmatprep.subr.bf16.mxu0 %v238
  %1044 = vmatpush1.bf16.msra.mxu0 %v237
  %1045 = vmatprep.subr.bf16.mxu0 %v242
  %1046 = vmatpush1.bf16.msra.mxu0 %v241
  %1047 = vmatprep.subr.bf16.mxu0 %v246
  %1048 = vmatpush1.bf16.msra.mxu0 %v245
  %1049 = vmatprep.subr.bf16.mxu0 %v250
  %1050 = vmatpush1.bf16.msra.mxu0 %v249
  %1051 = vmatprep.subr.bf16.mxu0 %v254
  %1052 = vmatpush1.bf16.msra.mxu0 %v253
  %1053 = vmatprep.subr.bf16.mxu0 %v258
  %1054 = vmatpush1.bf16.msra.mxu0 %v257
  %1055 = vmatprep.subr.bf16.mxu0 %v262
  %1056 = vmatpush1.bf16.msra.mxu0 %v261
  %1057 = vmatprep.subr.bf16.mxu0 0
  %1058 = vmatpush1.bf16.msra.mxu0 0
  %1059 = vmatprep.subr.bf16.mxu0 0
  %1060 = vmatpush1.bf16.msra.mxu0 0
  %1061 = vmatprep.subr.bf16.mxu0 0
  %1062 = vmatpush1.bf16.msra.mxu0 0
  %1063 = vmatprep.subr.bf16.mxu0 0
  %1064 = vmatpush1.bf16.msra.mxu0 0
  %1065 = vmatprep.subr.bf16.mxu0 0
  %1066 = vmatpush1.bf16.msra.mxu0 0
  %1067 = vmatprep.subr.bf16.mxu0 0
  %1068 = vmatpush1.bf16.msra.mxu0 0
  %1069 = vmatprep.subr.bf16.mxu0 0
  %1070 = vmatpush1.bf16.msra.mxu0 0
  %1071 = vmatprep.subr.bf16.mxu0 0
  %1072 = vmatpush1.bf16.msra.mxu0 0
  %1073 = vmatprep.mubr.bf16.mxu0 0
  %1074 = vmatmul.mubr.bf16.gmra.mrb[0].mxu0 %v1040
  %v1075 = vpop.f32.mrb[0].mxu0
  %v1076 = vadd.f32 0.0, %v1075
  %v1077 = vpop.f32.mrb[0].mxu0
  %v1078 = vadd.f32 0.0, %v1077
  %v1079 = vpop.f32.mrb[0].mxu0
  %v1080 = vpop.f32.mrb[0].mxu0
  %1081 = vdwg.mxu0
  %1082 = vmatprep.subr.bf16.mxu0 %v236
  %1083 = vmatpush1.bf16.msra.mxu0 %v235
  %1084 = vmatprep.subr.bf16.mxu0 %v240
  %1085 = vmatpush1.bf16.msra.mxu0 %v239
  %1086 = vmatprep.subr.bf16.mxu0 %v244
  %1087 = vmatpush1.bf16.msra.mxu0 %v243
  %1088 = vmatprep.subr.bf16.mxu0 %v248
  %1089 = vmatpush1.bf16.msra.mxu0 %v247
  %1090 = vmatprep.subr.bf16.mxu0 %v252
  %1091 = vmatpush1.bf16.msra.mxu0 %v251
  %1092 = vmatprep.subr.bf16.mxu0 %v256
  %1093 = vmatpush1.bf16.msra.mxu0 %v255
  %1094 = vmatprep.subr.bf16.mxu0 %v260
  %1095 = vmatpush1.bf16.msra.mxu0 %v259
  %1096 = vmatprep.subr.bf16.mxu0 %v264
  %1097 = vmatpush1.bf16.msra.mxu0 %v263
  %1098 = vmatprep.subr.bf16.mxu0 0
  %1099 = vmatpush1.bf16.msra.mxu0 0
  %1100 = vmatprep.subr.bf16.mxu0 0
  %1101 = vmatpush1.bf16.msra.mxu0 0
  %1102 = vmatprep.subr.bf16.mxu0 0
  %1103 = vmatpush1.bf16.msra.mxu0 0
  %1104 = vmatprep.subr.bf16.mxu0 0
  %1105 = vmatpush1.bf16.msra.mxu0 0
  %1106 = vmatprep.subr.bf16.mxu0 0
  %1107 = vmatpush1.bf16.msra.mxu0 0
  %1108 = vmatprep.subr.bf16.mxu0 0
  %1109 = vmatpush1.bf16.msra.mxu0 0
  %1110 = vmatprep.subr.bf16.mxu0 0
  %1111 = vmatpush1.bf16.msra.mxu0 0
  %1112 = vmatprep.subr.bf16.mxu0 0
  %1113 = vmatpush1.bf16.msra.mxu0 0
  %1114 = vmatprep.mubr.bf16.mxu0 0
  %1115 = vmatmul.mubr.bf16.gmra.mrb[0].mxu0 %v1040
  %v1116 = vpop.f32.mrb[0].mxu0
  %v1117 = vadd.f32 0.0, %v1116
  %v1118 = vpop.f32.mrb[0].mxu0
  %v1119 = vadd.f32 0.0, %v1118
  %v1120 = vpop.f32.mrb[0].mxu0
  %v1121 = vpop.f32.mrb[0].mxu0
  %1122 = vdwg.mxu0
  %v1123 = vadd.f32 %v1036, %v1076
  %v1124 = vadd.f32 %v1037, %v1078
  %v1125 = vadd.f32 %v1038, %v1117
  %v1126 = vadd.f32 %v1039, %v1119
  %v1127 = vxor.u32 %v1123, 2147483648
  %v1128 = vmul.f32 %v1127, 1.442695
  %v1129 = vpow.pop %v1128
  %v1130 = vadd.f32 %v1129, 1.0
  %v1131 = vrcp.pop %v1130
  %v1132 = vmul.f32 1.0, %v1131
  %v1133 = vxor.u32 %v1124, 2147483648
  %v1134 = vmul.f32 %v1133, 1.442695
  %v1135 = vpow.pop %v1134
  %v1136 = vadd.f32 %v1135, 1.0
  %v1137 = vrcp.pop %v1136
  %v1138 = vmul.f32 1.0, %v1137
  %v1139 = vtanh.pop %v1125
  %v1140 = vxor.u32 %v1126, 2147483648
  %v1141 = vmul.f32 %v1140, 1.442695
  %v1142 = vpow.pop %v1141
  %v1143 = vadd.f32 %v1142, 1.0
  %v1144 = vrcp.pop %v1143
  %v1145 = vmul.f32 1.0, %v1144
  %v1146 = vmul.f32 %v1138, %v1024
  %v1147 = vmul.f32 %v1132, %v1139
  %v1148 = vadd.f32 %v1146, %v1147
  %v1149 = vtanh.pop %v1148
  %v1150 = vmul.f32 %v1145, %v1149
  %vm1151 = vcmp.eq.s32.totalorder %v43, 7
  %v1152 = vsel %vm1151, %v41, 0.0
  %v1153 = vsel %vm48, %v1152, 0.0
  %1154 = vadd.xlane.f32.xlu0 %v1153
  %v1155 = vpop.xlane.xlu0 %1154
  %v1156 = vmul.f32 %v1155, %v57
  %v1157 = vmul.f32 %v1155, %v61
  %v1158 = vmul.f32 %v1155, %v65
  %v1159 = vmul.f32 %v1155, %v69
  %v1160 = vadd.f32 %v1156, %v83
  %v1161 = vadd.f32 %v1157, %v87
  %v1162 = vadd.f32 %v1158, %v91
  %v1163 = vadd.f32 %v1159, %v95
  %v1164 = vpack.c.bf16 %v1150, %v1150
  %1165 = vmatprep.subr.bf16.mxu0 %v234
  %1166 = vmatpush1.bf16.msra.mxu0 %v233
  %1167 = vmatprep.subr.bf16.mxu0 %v238
  %1168 = vmatpush1.bf16.msra.mxu0 %v237
  %1169 = vmatprep.subr.bf16.mxu0 %v242
  %1170 = vmatpush1.bf16.msra.mxu0 %v241
  %1171 = vmatprep.subr.bf16.mxu0 %v246
  %1172 = vmatpush1.bf16.msra.mxu0 %v245
  %1173 = vmatprep.subr.bf16.mxu0 %v250
  %1174 = vmatpush1.bf16.msra.mxu0 %v249
  %1175 = vmatprep.subr.bf16.mxu0 %v254
  %1176 = vmatpush1.bf16.msra.mxu0 %v253
  %1177 = vmatprep.subr.bf16.mxu0 %v258
  %1178 = vmatpush1.bf16.msra.mxu0 %v257
  %1179 = vmatprep.subr.bf16.mxu0 %v262
  %1180 = vmatpush1.bf16.msra.mxu0 %v261
  %1181 = vmatprep.subr.bf16.mxu0 0
  %1182 = vmatpush1.bf16.msra.mxu0 0
  %1183 = vmatprep.subr.bf16.mxu0 0
  %1184 = vmatpush1.bf16.msra.mxu0 0
  %1185 = vmatprep.subr.bf16.mxu0 0
  %1186 = vmatpush1.bf16.msra.mxu0 0
  %1187 = vmatprep.subr.bf16.mxu0 0
  %1188 = vmatpush1.bf16.msra.mxu0 0
  %1189 = vmatprep.subr.bf16.mxu0 0
  %1190 = vmatpush1.bf16.msra.mxu0 0
  %1191 = vmatprep.subr.bf16.mxu0 0
  %1192 = vmatpush1.bf16.msra.mxu0 0
  %1193 = vmatprep.subr.bf16.mxu0 0
  %1194 = vmatpush1.bf16.msra.mxu0 0
  %1195 = vmatprep.subr.bf16.mxu0 0
  %1196 = vmatpush1.bf16.msra.mxu0 0
  %1197 = vmatprep.mubr.bf16.mxu0 0
  %1198 = vmatmul.mubr.bf16.gmra.mrb[0].mxu0 %v1164
  %v1199 = vpop.f32.mrb[0].mxu0
  %v1200 = vadd.f32 0.0, %v1199
  %v1201 = vpop.f32.mrb[0].mxu0
  %v1202 = vadd.f32 0.0, %v1201
  %v1203 = vpop.f32.mrb[0].mxu0
  %v1204 = vpop.f32.mrb[0].mxu0
  %1205 = vdwg.mxu0
  %1206 = vmatprep.subr.bf16.mxu0 %v236
  %1207 = vmatpush1.bf16.msra.mxu0 %v235
  %1208 = vmatprep.subr.bf16.mxu0 %v240
  %1209 = vmatpush1.bf16.msra.mxu0 %v239
  %1210 = vmatprep.subr.bf16.mxu0 %v244
  %1211 = vmatpush1.bf16.msra.mxu0 %v243
  %1212 = vmatprep.subr.bf16.mxu0 %v248
  %1213 = vmatpush1.bf16.msra.mxu0 %v247
  %1214 = vmatprep.subr.bf16.mxu0 %v252
  %1215 = vmatpush1.bf16.msra.mxu0 %v251
  %1216 = vmatprep.subr.bf16.mxu0 %v256
  %1217 = vmatpush1.bf16.msra.mxu0 %v255
  %1218 = vmatprep.subr.bf16.mxu0 %v260
  %1219 = vmatpush1.bf16.msra.mxu0 %v259
  %1220 = vmatprep.subr.bf16.mxu0 %v264
  %1221 = vmatpush1.bf16.msra.mxu0 %v263
  %1222 = vmatprep.subr.bf16.mxu0 0
  %1223 = vmatpush1.bf16.msra.mxu0 0
  %1224 = vmatprep.subr.bf16.mxu0 0
  %1225 = vmatpush1.bf16.msra.mxu0 0
  %1226 = vmatprep.subr.bf16.mxu0 0
  %1227 = vmatpush1.bf16.msra.mxu0 0
  %1228 = vmatprep.subr.bf16.mxu0 0
  %1229 = vmatpush1.bf16.msra.mxu0 0
  %1230 = vmatprep.subr.bf16.mxu0 0
  %1231 = vmatpush1.bf16.msra.mxu0 0
  %1232 = vmatprep.subr.bf16.mxu0 0
  %1233 = vmatpush1.bf16.msra.mxu0 0
  %1234 = vmatprep.subr.bf16.mxu0 0
  %1235 = vmatpush1.bf16.msra.mxu0 0
  %1236 = vmatprep.subr.bf16.mxu0 0
  %1237 = vmatpush1.bf16.msra.mxu0 0
  %1238 = vmatprep.mubr.bf16.mxu0 0
  %1239 = vmatmul.mubr.bf16.gmra.mrb[0].mxu0 %v1164
  %v1240 = vpop.f32.mrb[0].mxu0
  %v1241 = vadd.f32 0.0, %v1240
  %v1242 = vpop.f32.mrb[0].mxu0
  %v1243 = vadd.f32 0.0, %v1242
  %v1244 = vpop.f32.mrb[0].mxu0
  %v1245 = vpop.f32.mrb[0].mxu0
  %1246 = vdwg.mxu0
  %v1247 = vadd.f32 %v1160, %v1200
  %v1248 = vadd.f32 %v1161, %v1202
  %v1249 = vadd.f32 %v1162, %v1241
  %v1250 = vadd.f32 %v1163, %v1243
  %v1251 = vxor.u32 %v1247, 2147483648
  %v1252 = vmul.f32 %v1251, 1.442695
  %v1253 = vpow.pop %v1252
  %v1254 = vadd.f32 %v1253, 1.0
  %v1255 = vrcp.pop %v1254
  %v1256 = vmul.f32 1.0, %v1255
  %v1257 = vxor.u32 %v1248, 2147483648
  %v1258 = vmul.f32 %v1257, 1.442695
  %v1259 = vpow.pop %v1258
  %v1260 = vadd.f32 %v1259, 1.0
  %v1261 = vrcp.pop %v1260
  %v1262 = vmul.f32 1.0, %v1261
  %v1263 = vtanh.pop %v1249
  %v1264 = vxor.u32 %v1250, 2147483648
  %v1265 = vmul.f32 %v1264, 1.442695
  %v1266 = vpow.pop %v1265
  %v1267 = vadd.f32 %v1266, 1.0
  %v1268 = vrcp.pop %v1267
  %v1269 = vmul.f32 1.0, %v1268
  %v1270 = vmul.f32 %v1262, %v1148
  %v1271 = vmul.f32 %v1256, %v1263
  %v1272 = vadd.f32 %v1270, %v1271
  %v1273 = vtanh.pop %v1272
  %v1274 = vmul.f32 %v1269, %v1273
  %v1275 = vpack.c.bf16 %v1274, %v1274
  %v1276 = vld [vmem:[%s4] sm:$0xf]
  %v1277 = vld [vmem:[%s4 + $0x4] sm:$0xf]
  %v1278 = vld [vmem:[%s4 + $0x8] sm:$0xf]
  %v1279 = vld [vmem:[%s4 + $0xc] sm:$0xf]
  %v1280 = vld [vmem:[%s4 + $0x10] sm:$0xf]
  %v1281 = vld [vmem:[%s4 + $0x14] sm:$0xf]
  %v1282 = vld [vmem:[%s4 + $0x18] sm:$0xf]
  %v1283 = vld [vmem:[%s4 + $0x1c] sm:$0xf]
  %v1284 = vld [vmem:[%s4 + $0x20] sm:$0xf]
  %v1285 = vld [vmem:[%s4 + $0x24] sm:$0xf]
  %v1286 = vld [vmem:[%s4 + $0x28] sm:$0xf]
  %v1287 = vld [vmem:[%s4 + $0x2c] sm:$0xf]
  %v1288 = vld [vmem:[%s4 + $0x30] sm:$0xf]
  %v1289 = vld [vmem:[%s4 + $0x34] sm:$0xf]
  %v1290 = vld [vmem:[%s4 + $0x38] sm:$0xf]
  %v1291 = vld [vmem:[%s4 + $0x3c] sm:$0xf]
  %v1292 = vld [vmem:[%s5] sm:$0x1]
  %v1294 = vlaneseq
  %v1295 = vshrl.u32 %v1294, 7
  %v1296 = vsub.s32 0, %v1295
  %v1297 = vrot.slane %v1292, %v1296
  %v1315 = vunpack.c.l.b16 %v1276
  %v1316 = vunpack.c.l.b16 %v1277
  %v1317 = vunpack.c.l.b16 %v1278
  %v1318 = vunpack.c.l.b16 %v1279
  %v1319 = vunpack.c.l.b16 %v1280
  %v1320 = vunpack.c.l.b16 %v1281
  %v1321 = vunpack.c.l.b16 %v1282
  %v1322 = vunpack.c.l.b16 %v1283
  %v1323 = vunpack.c.l.b16 %v1284
  %v1324 = vunpack.c.l.b16 %v1285
  %v1325 = vunpack.c.l.b16 %v1286
  %v1326 = vunpack.c.l.b16 %v1287
  %v1327 = vunpack.c.l.b16 %v1288
  %v1328 = vunpack.c.l.b16 %v1289
  %v1329 = vunpack.c.l.b16 %v1290
  %v1330 = vunpack.c.l.b16 %v1291
  %v1331 = vpack.c.b16 %v1316, %v1315
  %v1332 = vpack.c.b16 %v1318, %v1317
  %v1333 = vpack.c.b16 %v1320, %v1319
  %v1334 = vpack.c.b16 %v1322, %v1321
  %v1335 = vpack.c.b16 %v1324, %v1323
  %v1336 = vpack.c.b16 %v1326, %v1325
  %v1337 = vpack.c.b16 %v1328, %v1327
  %v1338 = vpack.c.b16 %v1330, %v1329
  %1347 = vmatprep.subr.bf16.mxu0 0
  %1348 = vmatpush1.bf16.msra.mxu0 %v1331
  %1349 = vmatprep.subr.bf16.mxu0 0
  %1350 = vmatpush1.bf16.msra.mxu0 %v1332
  %1351 = vmatprep.subr.bf16.mxu0 0
  %1352 = vmatpush1.bf16.msra.mxu0 %v1333
  %1353 = vmatprep.subr.bf16.mxu0 0
  %1354 = vmatpush1.bf16.msra.mxu0 %v1334
  %1355 = vmatprep.subr.bf16.mxu0 0
  %1356 = vmatpush1.bf16.msra.mxu0 %v1335
  %1357 = vmatprep.subr.bf16.mxu0 0
  %1358 = vmatpush1.bf16.msra.mxu0 %v1336
  %1359 = vmatprep.subr.bf16.mxu0 0
  %1360 = vmatpush1.bf16.msra.mxu0 %v1337
  %1361 = vmatprep.subr.bf16.mxu0 0
  %1362 = vmatpush1.bf16.msra.mxu0 %v1338
  %1363 = vmatprep.subr.bf16.mxu0 0
  %1364 = vmatpush1.bf16.msra.mxu0 0
  %1365 = vmatprep.subr.bf16.mxu0 0
  %1366 = vmatpush1.bf16.msra.mxu0 0
  %1367 = vmatprep.subr.bf16.mxu0 0
  %1368 = vmatpush1.bf16.msra.mxu0 0
  %1369 = vmatprep.subr.bf16.mxu0 0
  %1370 = vmatpush1.bf16.msra.mxu0 0
  %1371 = vmatprep.subr.bf16.mxu0 0
  %1372 = vmatpush1.bf16.msra.mxu0 0
  %1373 = vmatprep.subr.bf16.mxu0 0
  %1374 = vmatpush1.bf16.msra.mxu0 0
  %1375 = vmatprep.subr.bf16.mxu0 0
  %1376 = vmatpush1.bf16.msra.mxu0 0
  %1377 = vmatprep.subr.bf16.mxu0 0
  %1378 = vmatpush1.bf16.msra.mxu0 0
  %1379 = vmatprep.mubr.bf16.mxu0 0
  %1380 = vmatmul.mubr.bf16.gmra.mrb[0].mxu0 %v1275
  %v1381 = vpop.f32.mrb[0].mxu0
  %v1382 = vadd.f32 %v1297, %v1381
  %v1383 = vpop.f32.mrb[0].mxu0
  %v1384 = vpop.f32.mrb[0].mxu0
  %v1385 = vpop.f32.mrb[0].mxu0
  %1386 = vdwg.mxu0
  %v1387 = vld [vmem:[%s6] sm:$0x1]
  %v1389 = vlaneseq
  %v1390 = vshrl.u32 %v1389, 7
  %v1391 = vsub.s32 0, %v1390
  %v1392 = vrot.slane %v1387, %v1391
  %v1394 = vmul.f32 %v1382, %v1392
  %1395 = vadd.xlane.f32.xlu0 %v1394
  %v1396 = vpop.xlane.xlu0 %1395
  %v1397 = vld [vmem:[#allocation2] sm:$0x1]
  %v1399 = vlaneseq
  %v1400 = vshrl.u32 %v1399, 7
  %v1401 = vsub.s32 0, %v1400
  %v1402 = vrot.slane %v1397, %v1401
  %v1404 = vadd.f32 %v1396, %v1402
  %vm1405 = vcmask 7168
  %1406 = vst.msk [vmem:[%s10] sm:$0xff] %vm1405, %v1404
  %1407 = vst [vmem:[%s11] sm:$0xff] %v1274
  %1408 = vst [vmem:[%s12] sm:$0xff] %v1272
  // Predicated region
  $region42: #{_forward_jit.1} parent=0 // pred_check
    _
  $region43: #{_forward_jit.1} parent=0 // pred_check_branch
    %1410 = sbr.rel (0) target = $region45
  $region44: #{_forward_jit.1} parent=0 // pred_region
    _
  $region45: #{_forward_jit.1} parent=0 // pred_fallthru
    _
  // Predicated region
  $region46: #{_forward_jit.1} parent=0 // pred_check
    _
  $region47: #{_forward_jit.1} parent=0 // pred_check_branch
    %1412 = sbr.rel (0) target = $region49
  $region48: #{_forward_jit.1} parent=0 // pred_region
    _
  $region49: #{_forward_jit.1} parent=0 // pred_fallthru
    _
  // Predicated region
  $region50: #{_forward_jit.1} parent=0 // pred_check
    _
  $region51: #{_forward_jit.1} parent=0 // pred_check_branch
    %1414 = sbr.rel (0) target = $region53
  $region52: #{_forward_jit.1} parent=0 // pred_region
    _
  $region53: #{_forward_jit.1} parent=0 // pred_fallthru
    _
  // Predicated region
  $region54: #{_forward_jit.1} parent=0 // pred_check
    _
  $region55: #{_forward_jit.1} parent=0 // pred_check_branch
    %1416 = sbr.rel (0) target = $region57
  $region56: #{_forward_jit.1} parent=0 // pred_region
    _
  $region57: #{_forward_jit.1} parent=0 // pred_fallthru
    _
  // Predicated region
  $region58: #{_forward_jit.1} parent=0 // pred_check
    _
  $region59: #{_forward_jit.1} parent=0 // pred_check_branch
    %1418 = sbr.rel (0) target = $region61
  $region60: #{_forward_jit.1} parent=0 // pred_region
    _
  $region61: #{_forward_jit.1} parent=0 // pred_fallthru
    _
  // Predicated region
  $region62: #{_forward_jit.1} parent=0 // pred_check
    _
  $region63: #{_forward_jit.1} parent=0 // pred_check_branch
    %1420 = sbr.rel (0) target = $region65
  $region64: #{_forward_jit.1} parent=0 // pred_region
    _
  $region65: #{_forward_jit.1} parent=0 // pred_fallthru
    _

</llo_original>
